<compile_context>
chip_gen: v7x
topology: tpu7x:2x2x1
jax: 0.10.0
libtpu: 0.0.40
codegen_flags: <defaults>
</compile_context>

<pallas_src>
import functools

import jax
import jax.numpy as jnp
from jax.experimental import pallas as pl
from jax.experimental.pallas import tpu as pltpu

BN_EPS = 1e-5


def _vmem_limit_bytes():
    """Generation-aware scoped-VMEM budget (~75% of physical, capped 96 MiB)."""
    try:
        cap = int(getattr(pltpu.get_tpu_info(), "vmem_capacity_bytes",
                          64 * 1024 * 1024))
    except Exception:
        cap = 64 * 1024 * 1024
    return int(min(cap * 3 // 4, 96 * 1024 * 1024))


def _choose_tile(n, max_tile):
    """Largest tile <= max_tile dividing n; prefer multiples of 512, then 8."""
    if n <= max_tile:
        return n
    for step in (512, 256, 128, 64, 32, 16, 8):
        t = (max_tile // step) * step
        while t >= step:
            if n % t == 0:
                return t
            t -= step
    # TODO(synk): ragged n with no multiple-of-8 divisor; falls back to one
    # whole-axis tile instead of masked remainder tiles.
    return n


# ---------------------------------------------------------------------------
# Kernels
# ---------------------------------------------------------------------------
def _first_layer_kernel(x_ref, w_ref, y_ref, stats_ref, *, input_channels):
    """Raw-input layer: channel slice + cast + (rows,ic)@(ic,64) + BN stats.

    The tiny contraction (ic ~ 3) is a VPU broadcast-sum, so no padded-K
    matmul is needed and the original x gets no extra HBM round trip.
    """
    xb = x_ref[...].astype(jnp.float32)                 # (tile, C_raw)
    w = w_ref[...].astype(jnp.float32)                  # (ic, cout)
    y = xb[:, 0:1] * w[0:1, :]
    for c in range(1, input_channels):
        y = y + xb[:, c:c + 1] * w[c:c + 1, :]          # (tile, cout) f32
    y_ref[...] = y.astype(y_ref.dtype)
    stats_ref[...] = jnp.concatenate(
        [jnp.sum(y, axis=0, keepdims=True),
         jnp.sum(y * y, axis=0, keepdims=True)], axis=0)


def _mid_layer_kernel(h_ref, scale_ref, shift_ref, w_ref, y_ref, stats_ref, *,
                      compute_dtype):
    """Fused [prev-BN affine + ReLU] -> 1x1-conv matmul -> per-tile BN stats."""
    h = jnp.maximum(h_ref[...].astype(jnp.float32) * scale_ref[...]
                    + shift_ref[...], 0.0)              # (tile, cin) f32
    y = jnp.dot(h.astype(compute_dtype), w_ref[...],
                preferred_element_type=jnp.float32)     # (tile, cout) f32
    y_ref[...] = y.astype(y_ref.dtype)
    stats_ref[...] = jnp.concatenate(
        [jnp.sum(y, axis=0, keepdims=True),
         jnp.sum(y * y, axis=0, keepdims=True)], axis=0)


def _last_layer_pool_kernel(h_ref, scale_ref, shift_ref, w_ref, acc_ref, *,
                            compute_dtype):
    """Fused BN4+ReLU -> (tile,128)@(128,1024) -> per-batch max/min/sum/sumsq.

    The 1024-wide activation never leaves VMEM.  acc rows: 0=max, 1=min,
    2=sum, 3=sumsq of pre-BN y; the output block is resident across the
    "arbitrary" point-tile axis (accumulator pattern).
    """
    t = pl.program_id(1)
    h = jnp.maximum(h_ref[...].astype(jnp.float32) * scale_ref[...]
                    + shift_ref[...], 0.0)              # (tile, 128) f32
    y = jnp.dot(h.astype(compute_dtype), w_ref[...],
                preferred_element_type=jnp.float32)     # (tile, 1024) f32
    mx = jnp.max(y, axis=0, keepdims=True)
    mn = jnp.min(y, axis=0, keepdims=True)
    s = jnp.sum(y, axis=0, keepdims=True)
    sq = jnp.sum(y * y, axis=0, keepdims=True)

    @pl.when(t == 0)
    def _init():
        acc_ref[0:1, :] = mx
        acc_ref[1:2, :] = mn
        acc_ref[2:3, :] = s
        acc_ref[3:4, :] = sq

    @pl.when(t != 0)
    def _update():
        acc_ref[0:1, :] = jnp.maximum(acc_ref[0:1, :], mx)
        acc_ref[1:2, :] = jnp.minimum(acc_ref[1:2, :], mn)
        acc_ref[2:3, :] = acc_ref[2:3, :] + s
        acc_ref[3:4, :] = acc_ref[3:4, :] + sq


# ---------------------------------------------------------------------------
# pallas_call wrappers
# ---------------------------------------------------------------------------
def _first_layer_call(x2d, w0, *, input_channels, tile_rows, compute_dtype,
                      vmem_limit):
    rows, c_raw = x2d.shape
    cout = w0.shape[1]
    nt = rows // tile_rows
    act_bytes = jnp.dtype(compute_dtype).itemsize
    cost = pl.CostEstimate(
        flops=int(2 * rows * input_channels * cout + 4 * rows * cout),
        transcendentals=0,
        bytes_accessed=int(rows * c_raw * x2d.dtype.itemsize
                           + rows * cout * act_bytes + nt * 2 * cout * 4),
    )
    return pl.pallas_call(
        functools.partial(_first_layer_kernel, input_channels=input_channels),
        out_shape=(jax.ShapeDtypeStruct((rows, cout), compute_dtype),
                   jax.ShapeDtypeStruct((nt, 2, cout), jnp.float32)),
        grid_spec=pltpu.PrefetchScalarGridSpec(
            num_scalar_prefetch=0,
            grid=(nt,),
            in_specs=[pl.BlockSpec((tile_rows, c_raw), lambda t: (t, 0)),
                      pl.BlockSpec((input_channels, cout), lambda t: (0, 0))],
            out_specs=(pl.BlockSpec((tile_rows, cout), lambda t: (t, 0)),
                       pl.BlockSpec((None, 2, cout), lambda t: (t, 0, 0))),
        ),
        compiler_params=pltpu.CompilerParams(
            dimension_semantics=("parallel",),
            vmem_limit_bytes=vmem_limit),
        cost_estimate=cost,
    )(x2d, w0)


def _mid_layer_call(h, scale, shift, w, *, tile_rows, compute_dtype, vmem_limit):
    rows, cin = h.shape
    cout = w.shape[1]
    nt = rows // tile_rows
    act_bytes = jnp.dtype(compute_dtype).itemsize
    cost = pl.CostEstimate(
        flops=int(2 * rows * cin * cout + 6 * rows * cin),
        transcendentals=0,
        bytes_accessed=int(rows * (cin + cout) * act_bytes
                           + cin * cout * act_bytes + nt * 2 * cout * 4),
    )
    return pl.pallas_call(
        functools.partial(_mid_layer_kernel, compute_dtype=compute_dtype),
        out_shape=(jax.ShapeDtypeStruct((rows, cout), compute_dtype),
                   jax.ShapeDtypeStruct((nt, 2, cout), jnp.float32)),
        grid_spec=pltpu.PrefetchScalarGridSpec(
            num_scalar_prefetch=0,
            grid=(nt,),
            in_specs=[pl.BlockSpec((tile_rows, cin), lambda t: (t, 0)),
                      pl.BlockSpec((1, cin), lambda t: (0, 0)),
                      pl.BlockSpec((1, cin), lambda t: (0, 0)),
                      pl.BlockSpec((cin, cout), lambda t: (0, 0))],
            out_specs=(pl.BlockSpec((tile_rows, cout), lambda t: (t, 0)),
                       pl.BlockSpec((None, 2, cout), lambda t: (t, 0, 0))),
        ),
        compiler_params=pltpu.CompilerParams(
            dimension_semantics=("parallel",),
            vmem_limit_bytes=vmem_limit),
        cost_estimate=cost,
    )(h, scale, shift, w)


def _last_layer_pool_call(h, scale, shift, w, *, tile_pts, compute_dtype,
                          vmem_limit):
    B, N, cin = h.shape
    cout = w.shape[1]
    nt = N // tile_pts
    act_bytes = jnp.dtype(compute_dtype).itemsize
    cost = pl.CostEstimate(
        flops=int(2 * B * N * cin * cout + 8 * B * N * cout),
        transcendentals=0,
        bytes_accessed=int(B * N * cin * act_bytes + cin * cout * act_bytes
                           + B * 4 * cout * 4),
    )
    return pl.pallas_call(
        functools.partial(_last_layer_pool_kernel, compute_dtype=compute_dtype),
        out_shape=jax.ShapeDtypeStruct((B, 4, cout), jnp.float32),
        grid_spec=pltpu.PrefetchScalarGridSpec(
            num_scalar_prefetch=0,
            grid=(B, nt),
            in_specs=[pl.BlockSpec((None, tile_pts, cin), lambda b, t: (b, t, 0)),
                      pl.BlockSpec((1, cin), lambda b, t: (0, 0)),
                      pl.BlockSpec((1, cin), lambda b, t: (0, 0)),
                      pl.BlockSpec((cin, cout), lambda b, t: (0, 0))],
            out_specs=pl.BlockSpec((None, 4, cout), lambda b, t: (b, 0, 0)),
        ),
        compiler_params=pltpu.CompilerParams(
            dimension_semantics=("parallel", "arbitrary"),
            vmem_limit_bytes=vmem_limit),
        cost_estimate=cost,
    )(h, scale, shift, w)


def _bn_affine_from_stats(s, sq, gamma, beta, count):
    """Fold training-mode BatchNorm1d into one per-channel affine (f32)."""
    mean = s / count
    var = jnp.maximum(sq / count - mean * mean, 0.0)      # biased variance
    scale = gamma.reshape(-1) * jax.lax.rsqrt(var + BN_EPS)
    shift = beta.reshape(-1) - mean * scale
    return (scale.reshape(1, -1).astype(jnp.float32),
            shift.reshape(1, -1).astype(jnp.float32))


# ---------------------------------------------------------------------------
# Forward
# ---------------------------------------------------------------------------
def pointnet_encoder(x, params, input_channels, embedding_size, *,
                     compute_dtype=jnp.bfloat16, max_tile_rows=4096,
                     max_tile_points=1024):
    """x: (B, 1, N, C) -> (B, embedding_size)."""
    B, _, N, c_raw = x.shape
    assert params["fc_w"].shape[1] == embedding_size
    rows = B * N
    tile_rows = _choose_tile(rows, max_tile_rows)
    tile_pts = _choose_tile(N, max_tile_points)
    vmem_limit = _vmem_limit_bytes()
    count = jnp.float32(rows)
    layers = params["layers"]

    # (B,1,N,C) -> (B*N, C): pure metadata reshape (no HBM pass); the channel
    # slice / cast happen inside the first kernel.  Conv biases are dropped
    # everywhere: bias + training-mode BN cancels exactly.
    x2d = x.reshape(rows, c_raw)

    # Layer 0: input_channels -> 64 on the raw input block.
    h, stats = _first_layer_call(
        x2d, layers[0][0].astype(jnp.float32), input_channels=input_channels,
        tile_rows=tile_rows, compute_dtype=compute_dtype, vmem_limit=vmem_limit)
    scale, shift = _bn_affine_from_stats(
        jnp.sum(stats[:, 0, :], axis=0), jnp.sum(stats[:, 1, :], axis=0),
        layers[0][2], layers[0][3], count)

    # Layers 1..3: per-point 1x1 convs on the flattened (B*N) row axis.
    for li in range(1, len(layers) - 1):
        h, stats = _mid_layer_call(
            h, scale, shift, layers[li][0].astype(compute_dtype),
            tile_rows=tile_rows, compute_dtype=compute_dtype,
            vmem_limit=vmem_limit)
        scale, shift = _bn_affine_from_stats(
            jnp.sum(stats[:, 0, :], axis=0), jnp.sum(stats[:, 1, :], axis=0),
            layers[li][2], layers[li][3], count)

    # Layer 4 (128 -> 1024) fused with pooling: (B,N,1024) never hits HBM.
    h3 = h.reshape(B, N, h.shape[-1])                     # metadata reshape
    acc = _last_layer_pool_call(
        h3, scale, shift, layers[-1][0].astype(compute_dtype),
        tile_pts=tile_pts, compute_dtype=compute_dtype, vmem_limit=vmem_limit)

    # Tiny plain-JAX epilogue: exact BN5 over all B*N rows, monotone max-pool
    # recovery (max where scale>=0 else min -> correct for negative gammas),
    # ReLU, and one lane-dense (B,1024)@(1024,E) FC over all batches.
    scale5, shift5 = _bn_affine_from_stats(
        jnp.sum(acc[:, 2, :], axis=0), jnp.sum(acc[:, 3, :], axis=0),
        layers[-1][2], layers[-1][3], count)
    y_ext = jnp.where(scale5 >= 0.0, acc[:, 0, :], acc[:, 1, :])   # (B, 1024)
    pooled = jnp.maximum(y_ext * scale5 + shift5, 0.0)
    return pooled @ params["fc_w"].astype(jnp.float32) + \
        params["fc_b"].astype(jnp.float32)


# ---------------------------------------------------------------------------
# Params + reference
# ---------------------------------------------------------------------------
def init_params(key, input_channels, embedding_size):
    """Synthetic init mirroring the PyTorch layer shapes.

    Conv1d(cin, cout, 1) weight (cout, cin, 1) stored as (cin, cout);
    Linear(1024, emb) weight (emb, 1024) stored as (1024, emb).
    BN gamma=1, beta=0 (PyTorch default init).
    """
    dims = [(input_channels, 64), (64, 64), (64, 64), (64, 128), (128, 1024)]
    keys = jax.random.split(key, len(dims) + 1)
    layers = []
    for k, (cin, cout) in zip(keys[:-1], dims):
        kw, kb = jax.random.split(k)
        bound = 1.0 / (cin ** 0.5)
        w = jax.random.uniform(kw, (cin, cout), jnp.float32, -bound, bound)
        b = jax.random.uniform(kb, (1, cout), jnp.float32, -bound, bound)
        g = jnp.ones((1, cout), jnp.float32)
        be = jnp.zeros((1, cout), jnp.float32)
        layers.append((w, b, g, be))
    kw, kb = jax.random.split(keys[-1])
    bound = 1.0 / (1024 ** 0.5)
    fc_w = jax.random.uniform(kw, (1024, embedding_size), jnp.float32, -bound, bound)
    fc_b = jax.random.uniform(kb, (1, embedding_size), jnp.float32, -bound, bound)
    return {"layers": layers, "fc_w": fc_w, "fc_b": fc_b}


def reference_forward(x, params, input_channels):
    """Plain-JAX reference of the PyTorch forward (training-mode BN, with bias)."""
    B, _, N, _ = x.shape
    h = x[:, 0, :, :input_channels].reshape(B * N, input_channels).astype(jnp.float32)
    for (w, b, g, be) in params["layers"]:
        y = h @ w + b
        mu = jnp.mean(y, axis=0, keepdims=True)
        var = jnp.mean((y - mu) ** 2, axis=0, keepdims=True)
        h = jnp.maximum((y - mu) * jax.lax.rsqrt(var + BN_EPS) * g + be, 0.0)
    pooled = jnp.max(h.reshape(B, N, -1), axis=1)
    return pooled @ params["fc_w"] + params["fc_b"]


if __name__ == "__main__":
    B, N, C = 2, 16, 4          # x: B x 1 x N x C  (C >= input_channels)
    input_channels = 3
    embedding_size = 32

    key = jax.random.PRNGKey(0)
    kx, kp = jax.random.split(key)
    x = jax.random.normal(kx, (B, 1, N, C), dtype=jnp.float32)
    params = init_params(kp, input_channels, embedding_size)

    ref = reference_forward(x, params, input_channels)

    # f32 path: tight correctness check vs the PyTorch-faithful reference.
    fwd_f32 = jax.jit(functools.partial(
        pointnet_encoder, input_channels=input_channels,
        embedding_size=embedding_size, compute_dtype=jnp.float32))
    out = jax.block_until_ready(fwd_f32(x, params))
    assert out.shape == (B, embedding_size)
    assert jnp.allclose(out, ref, atol=1e-3, rtol=1e-3), (
        "f32 kernel mismatch: max_abs_err="
        f"{float(jnp.max(jnp.abs(out - ref)))}")

    # bf16 streamed-activation / bf16-matmul path (default, v6e/v7x perf mode).
    fwd_bf16 = jax.jit(functools.partial(
        pointnet_encoder, input_channels=input_channels,
        embedding_size=embedding_size))
    out_bf16 = jax.block_until_ready(fwd_bf16(x, params))
    assert out_bf16.shape == (B, embedding_size)
    assert bool(jnp.all(jnp.isfinite(out_bf16)))
    assert jnp.allclose(out_bf16, ref, atol=3e-1, rtol=3e-1), "bf16 kernel diverged"

    print("KERNEL_OK")
</pallas_src>

<mosaic_0001>
module attributes {stable_mosaic.version = 11 : i64} {
  func.func @_mid_layer_kernel(%arg0: i32, %arg1: memref<32x64xf32, #tpu.memory_space<vmem>>, %arg2: memref<1x64xf32, #tpu.memory_space<vmem>>, %arg3: memref<1x64xf32, #tpu.memory_space<vmem>>, %arg4: memref<64x64xf32, #tpu.memory_space<vmem>>, %arg5: memref<32x64xf32, #tpu.memory_space<vmem>>, %arg6: memref<1x2x64xf32, #tpu.memory_space<vmem>>) attributes {dimension_semantics = [#tpu.dimension_semantics<parallel>], iteration_bounds = array<i64: 1>, scalar_prefetch = 0 : i64, scratch_operands = 0 : i64, tpu.core_type = #tpu.core_type<tc>, window_params = [{transform_indices = @transform_0, window_bounds = array<i64: 32, 64>}, {pipeline_mode = #tpu.pipeline_mode<synchronous>, transform_indices = @transform_1, window_bounds = array<i64: 1, 64>}, {pipeline_mode = #tpu.pipeline_mode<synchronous>, transform_indices = @transform_2, window_bounds = array<i64: 1, 64>}, {pipeline_mode = #tpu.pipeline_mode<synchronous>, transform_indices = @transform_3, window_bounds = array<i64: 64, 64>}, {transform_indices = @transform_4, window_bounds = array<i64: 32, 64>}, {transform_indices = @transform_5, window_bounds = array<i64: 1, 2, 64>}]} {
    %c0 = arith.constant 0 : index
    %c0_0 = arith.constant 0 : index
    %0 = vector.load %arg1[%c0, %c0_0] : memref<32x64xf32, #tpu.memory_space<vmem>>, vector<32x64xf32>
    %c0_1 = arith.constant 0 : index
    %c0_2 = arith.constant 0 : index
    %1 = vector.load %arg2[%c0_1, %c0_2] : memref<1x64xf32, #tpu.memory_space<vmem>>, vector<1x64xf32>
    %2 = vector.broadcast %1 : vector<1x64xf32> to vector<32x64xf32>
    %3 = arith.mulf %0, %2 : vector<32x64xf32>
    %c0_3 = arith.constant 0 : index
    %c0_4 = arith.constant 0 : index
    %4 = vector.load %arg3[%c0_3, %c0_4] : memref<1x64xf32, #tpu.memory_space<vmem>>, vector<1x64xf32>
    %5 = vector.broadcast %4 : vector<1x64xf32> to vector<32x64xf32>
    %6 = arith.addf %3, %5 : vector<32x64xf32>
    %cst = arith.constant 0.000000e+00 : f32
    %7 = vector.broadcast %cst : f32 to vector<32x64xf32>
    %8 = arith.maximumf %6, %7 : vector<32x64xf32>
    %c0_5 = arith.constant 0 : index
    %c0_6 = arith.constant 0 : index
    %9 = vector.load %arg4[%c0_5, %c0_6] : memref<64x64xf32, #tpu.memory_space<vmem>>, vector<64x64xf32>
    %cst_7 = arith.constant dense<0.000000e+00> : vector<32x64xf32>
    %10 = tpu.matmul %8, %9, %cst_7 {dimension_numbers = #tpu.dot_dimension_numbers<[1], [0], [0], [1], [0, 0, 1, 1], [], []>} : vector<32x64xf32>, vector<64x64xf32>, vector<32x64xf32> -> vector<32x64xf32>
    %c0_8 = arith.constant 0 : index
    %c0_9 = arith.constant 0 : index
    %11 = vector.load %arg5[%c0_8, %c0_9] : memref<32x64xf32, #tpu.memory_space<vmem>>, vector<32x64xf32>
    tpu.vector_store %arg5[%c0_8, %c0_9], %10 {strides = array<i32>} : memref<32x64xf32, #tpu.memory_space<vmem>>, vector<32x64xf32>,
    %cst_10 = arith.constant dense<0.000000e+00> : vector<64xf32>
    %12 = vector.multi_reduction <add>, %10, %cst_10 [0] : vector<32x64xf32> to vector<64xf32>
    %13 = vector.shape_cast %12 : vector<64xf32> to vector<1x64xf32>
    %14 = arith.mulf %10, %10 : vector<32x64xf32>
    %cst_11 = arith.constant dense<0.000000e+00> : vector<64xf32>
    %15 = vector.multi_reduction <add>, %14, %cst_11 [0] : vector<32x64xf32> to vector<64xf32>
    %16 = vector.shape_cast %15 : vector<64xf32> to vector<1x64xf32>
    %17 = tpu.concatenate %13, %16 in 0 : vector<1x64xf32>, vector<1x64xf32> -> vector<2x64xf32>
    %c0_12 = arith.constant 0 : index
    %c0_13 = arith.constant 0 : index
    %c0_14 = arith.constant 0 : index
    %18 = vector.load %arg6[%c0_12, %c0_13, %c0_14] : memref<1x2x64xf32, #tpu.memory_space<vmem>>, vector<1x2x64xf32>
    %19 = vector.shape_cast %18 : vector<1x2x64xf32> to vector<2x64xf32>
    %20 = vector.shape_cast %17 : vector<2x64xf32> to vector<1x2x64xf32>
    tpu.vector_store %arg6[%c0_12, %c0_13, %c0_14], %20 {strides = array<i32>} : memref<1x2x64xf32, #tpu.memory_space<vmem>>, vector<1x2x64xf32>,
    return
  }
  func.func @transform_0(%arg0: i32) -> (i32, i32) {
    %c0_i32 = arith.constant 0 : i32
    %c0_i32_0 = arith.constant 0 : i32
    return %arg0, %c0_i32 : i32, i32
  }
  func.func @transform_1(%arg0: i32) -> (i32, i32) {
    %c0_i32 = arith.constant 0 : i32
    %c0_i32_0 = arith.constant 0 : i32
    %c0_i32_1 = arith.constant 0 : i32
    return %c0_i32, %c0_i32_0 : i32, i32
  }
  func.func @transform_2(%arg0: i32) -> (i32, i32) {
    %c0_i32 = arith.constant 0 : i32
    %c0_i32_0 = arith.constant 0 : i32
    %c0_i32_1 = arith.constant 0 : i32
    return %c0_i32, %c0_i32_0 : i32, i32
  }
  func.func @transform_3(%arg0: i32) -> (i32, i32) {
    %c0_i32 = arith.constant 0 : i32
    %c0_i32_0 = arith.constant 0 : i32
    %c0_i32_1 = arith.constant 0 : i32
    return %c0_i32, %c0_i32_0 : i32, i32
  }
  func.func @transform_4(%arg0: i32) -> (i32, i32) {
    %c0_i32 = arith.constant 0 : i32
    %c0_i32_0 = arith.constant 0 : i32
    return %arg0, %c0_i32 : i32, i32
  }
  func.func @transform_5(%arg0: i32) -> (i32, i32, i32) {
    %c0_i32 = arith.constant 0 : i32
    %c0_i32_0 = arith.constant 0 : i32
    %c0_i32_1 = arith.constant 0 : i32
    return %arg0, %c0_i32, %c0_i32_0 : i32, i32, i32
  }
}

module attributes {stable_mosaic.version = 11 : i64} {
  func.func @_first_layer_kernel(%arg0: i32, %arg1: memref<32x4xf32, #tpu.memory_space<vmem>>, %arg2: memref<3x64xf32, #tpu.memory_space<vmem>>, %arg3: memref<32x64xf32, #tpu.memory_space<vmem>>, %arg4: memref<1x2x64xf32, #tpu.memory_space<vmem>>) attributes {dimension_semantics = [#tpu.dimension_semantics<parallel>], iteration_bounds = array<i64: 1>, scalar_prefetch = 0 : i64, scratch_operands = 0 : i64, tpu.core_type = #tpu.core_type<tc>, window_params = [{transform_indices = @transform_0, window_bounds = array<i64: 32, 4>}, {pipeline_mode = #tpu.pipeline_mode<synchronous>, transform_indices = @transform_1, window_bounds = array<i64: 3, 64>}, {transform_indices = @transform_2, window_bounds = array<i64: 32, 64>}, {transform_indices = @transform_3, window_bounds = array<i64: 1, 2, 64>}]} {
    %c0 = arith.constant 0 : index
    %c0_0 = arith.constant 0 : index
    %0 = vector.load %arg1[%c0, %c0_0] : memref<32x4xf32, #tpu.memory_space<vmem>>, vector<32x4xf32>
    %c0_1 = arith.constant 0 : index
    %c0_2 = arith.constant 0 : index
    %1 = vector.load %arg2[%c0_1, %c0_2] : memref<3x64xf32, #tpu.memory_space<vmem>>, vector<3x64xf32>
    %2 = vector.extract_strided_slice %0 {offsets = [0, 0], sizes = [32, 1], strides = [1, 1]} : vector<32x4xf32> to vector<32x1xf32>
    %3 = vector.extract_strided_slice %1 {offsets = [0, 0], sizes = [1, 64], strides = [1, 1]} : vector<3x64xf32> to vector<1x64xf32>
    %4 = vector.broadcast %2 : vector<32x1xf32> to vector<32x64xf32>
    %5 = vector.broadcast %3 : vector<1x64xf32> to vector<32x64xf32>
    %6 = arith.mulf %4, %5 : vector<32x64xf32>
    %7 = vector.extract_strided_slice %0 {offsets = [0, 1], sizes = [32, 1], strides = [1, 1]} : vector<32x4xf32> to vector<32x1xf32>
    %8 = vector.extract_strided_slice %1 {offsets = [1, 0], sizes = [1, 64], strides = [1, 1]} : vector<3x64xf32> to vector<1x64xf32>
    %9 = vector.broadcast %7 : vector<32x1xf32> to vector<32x64xf32>
    %10 = vector.broadcast %8 : vector<1x64xf32> to vector<32x64xf32>
    %11 = arith.mulf %9, %10 : vector<32x64xf32>
    %12 = arith.addf %6, %11 : vector<32x64xf32>
    %13 = vector.extract_strided_slice %0 {offsets = [0, 2], sizes = [32, 1], strides = [1, 1]} : vector<32x4xf32> to vector<32x1xf32>
    %14 = vector.extract_strided_slice %1 {offsets = [2, 0], sizes = [1, 64], strides = [1, 1]} : vector<3x64xf32> to vector<1x64xf32>
    %15 = vector.broadcast %13 : vector<32x1xf32> to vector<32x64xf32>
    %16 = vector.broadcast %14 : vector<1x64xf32> to vector<32x64xf32>
    %17 = arith.mulf %15, %16 : vector<32x64xf32>
    %18 = arith.addf %12, %17 : vector<32x64xf32>
    %c0_3 = arith.constant 0 : index
    %c0_4 = arith.constant 0 : index
    %19 = vector.load %arg3[%c0_3, %c0_4] : memref<32x64xf32, #tpu.memory_space<vmem>>, vector<32x64xf32>
    tpu.vector_store %arg3[%c0_3, %c0_4], %18 {strides = array<i32>} : memref<32x64xf32, #tpu.memory_space<vmem>>, vector<32x64xf32>,
    %cst = arith.constant dense<0.000000e+00> : vector<64xf32>
    %20 = vector.multi_reduction <add>, %18, %cst [0] : vector<32x64xf32> to vector<64xf32>
    %21 = vector.shape_cast %20 : vector<64xf32> to vector<1x64xf32>
    %22 = arith.mulf %18, %18 : vector<32x64xf32>
    %cst_5 = arith.constant dense<0.000000e+00> : vector<64xf32>
    %23 = vector.multi_reduction <add>, %22, %cst_5 [0] : vector<32x64xf32> to vector<64xf32>
    %24 = vector.shape_cast %23 : vector<64xf32> to vector<1x64xf32>
    %25 = tpu.concatenate %21, %24 in 0 : vector<1x64xf32>, vector<1x64xf32> -> vector<2x64xf32>
    %c0_6 = arith.constant 0 : index
    %c0_7 = arith.constant 0 : index
    %c0_8 = arith.constant 0 : index
    %26 = vector.load %arg4[%c0_6, %c0_7, %c0_8] : memref<1x2x64xf32, #tpu.memory_space<vmem>>, vector<1x2x64xf32>
    %27 = vector.shape_cast %26 : vector<1x2x64xf32> to vector<2x64xf32>
    %28 = vector.shape_cast %25 : vector<2x64xf32> to vector<1x2x64xf32>
    tpu.vector_store %arg4[%c0_6, %c0_7, %c0_8], %28 {strides = array<i32>} : memref<1x2x64xf32, #tpu.memory_space<vmem>>, vector<1x2x64xf32>,
    return
  }
  func.func @transform_0(%arg0: i32) -> (i32, i32) {
    %c0_i32 = arith.constant 0 : i32
    %c0_i32_0 = arith.constant 0 : i32
    return %arg0, %c0_i32 : i32, i32
  }
  func.func @transform_1(%arg0: i32) -> (i32, i32) {
    %c0_i32 = arith.constant 0 : i32
    %c0_i32_0 = arith.constant 0 : i32
    %c0_i32_1 = arith.constant 0 : i32
    return %c0_i32, %c0_i32_0 : i32, i32
  }
  func.func @transform_2(%arg0: i32) -> (i32, i32) {
    %c0_i32 = arith.constant 0 : i32
    %c0_i32_0 = arith.constant 0 : i32
    return %arg0, %c0_i32 : i32, i32
  }
  func.func @transform_3(%arg0: i32) -> (i32, i32, i32) {
    %c0_i32 = arith.constant 0 : i32
    %c0_i32_0 = arith.constant 0 : i32
    %c0_i32_1 = arith.constant 0 : i32
    return %arg0, %c0_i32, %c0_i32_0 : i32, i32, i32
  }
}

module attributes {stable_mosaic.version = 11 : i64} {
  func.func @_mid_layer_kernel(%arg0: i32, %arg1: memref<32x64xf32, #tpu.memory_space<vmem>>, %arg2: memref<1x64xf32, #tpu.memory_space<vmem>>, %arg3: memref<1x64xf32, #tpu.memory_space<vmem>>, %arg4: memref<64x128xf32, #tpu.memory_space<vmem>>, %arg5: memref<32x128xf32, #tpu.memory_space<vmem>>, %arg6: memref<1x2x128xf32, #tpu.memory_space<vmem>>) attributes {dimension_semantics = [#tpu.dimension_semantics<parallel>], iteration_bounds = array<i64: 1>, scalar_prefetch = 0 : i64, scratch_operands = 0 : i64, tpu.core_type = #tpu.core_type<tc>, window_params = [{transform_indices = @transform_0, window_bounds = array<i64: 32, 64>}, {pipeline_mode = #tpu.pipeline_mode<synchronous>, transform_indices = @transform_1, window_bounds = array<i64: 1, 64>}, {pipeline_mode = #tpu.pipeline_mode<synchronous>, transform_indices = @transform_2, window_bounds = array<i64: 1, 64>}, {pipeline_mode = #tpu.pipeline_mode<synchronous>, transform_indices = @transform_3, window_bounds = array<i64: 64, 128>}, {transform_indices = @transform_4, window_bounds = array<i64: 32, 128>}, {transform_indices = @transform_5, window_bounds = array<i64: 1, 2, 128>}]} {
    %c0 = arith.constant 0 : index
    %c0_0 = arith.constant 0 : index
    %0 = vector.load %arg1[%c0, %c0_0] : memref<32x64xf32, #tpu.memory_space<vmem>>, vector<32x64xf32>
    %c0_1 = arith.constant 0 : index
    %c0_2 = arith.constant 0 : index
    %1 = vector.load %arg2[%c0_1, %c0_2] : memref<1x64xf32, #tpu.memory_space<vmem>>, vector<1x64xf32>
    %2 = vector.broadcast %1 : vector<1x64xf32> to vector<32x64xf32>
    %3 = arith.mulf %0, %2 : vector<32x64xf32>
    %c0_3 = arith.constant 0 : index
    %c0_4 = arith.constant 0 : index
    %4 = vector.load %arg3[%c0_3, %c0_4] : memref<1x64xf32, #tpu.memory_space<vmem>>, vector<1x64xf32>
    %5 = vector.broadcast %4 : vector<1x64xf32> to vector<32x64xf32>
    %6 = arith.addf %3, %5 : vector<32x64xf32>
    %cst = arith.constant 0.000000e+00 : f32
    %7 = vector.broadcast %cst : f32 to vector<32x64xf32>
    %8 = arith.maximumf %6, %7 : vector<32x64xf32>
    %c0_5 = arith.constant 0 : index
    %c0_6 = arith.constant 0 : index
    %9 = vector.load %arg4[%c0_5, %c0_6] : memref<64x128xf32, #tpu.memory_space<vmem>>, vector<64x128xf32>
    %cst_7 = arith.constant dense<0.000000e+00> : vector<32x128xf32>
    %10 = tpu.matmul %8, %9, %cst_7 {dimension_numbers = #tpu.dot_dimension_numbers<[1], [0], [0], [1], [0, 0, 1, 1], [], []>} : vector<32x64xf32>, vector<64x128xf32>, vector<32x128xf32> -> vector<32x128xf32>
    %c0_8 = arith.constant 0 : index
    %c0_9 = arith.constant 0 : index
    %11 = vector.load %arg5[%c0_8, %c0_9] : memref<32x128xf32, #tpu.memory_space<vmem>>, vector<32x128xf32>
    tpu.vector_store %arg5[%c0_8, %c0_9], %10 {strides = array<i32>} : memref<32x128xf32, #tpu.memory_space<vmem>>, vector<32x128xf32>,
    %cst_10 = arith.constant dense<0.000000e+00> : vector<128xf32>
    %12 = vector.multi_reduction <add>, %10, %cst_10 [0] : vector<32x128xf32> to vector<128xf32>
    %13 = vector.shape_cast %12 : vector<128xf32> to vector<1x128xf32>
    %14 = arith.mulf %10, %10 : vector<32x128xf32>
    %cst_11 = arith.constant dense<0.000000e+00> : vector<128xf32>
    %15 = vector.multi_reduction <add>, %14, %cst_11 [0] : vector<32x128xf32> to vector<128xf32>
    %16 = vector.shape_cast %15 : vector<128xf32> to vector<1x128xf32>
    %17 = tpu.concatenate %13, %16 in 0 : vector<1x128xf32>, vector<1x128xf32> -> vector<2x128xf32>
    %c0_12 = arith.constant 0 : index
    %c0_13 = arith.constant 0 : index
    %c0_14 = arith.constant 0 : index
    %18 = vector.load %arg6[%c0_12, %c0_13, %c0_14] : memref<1x2x128xf32, #tpu.memory_space<vmem>>, vector<1x2x128xf32>
    %19 = vector.shape_cast %18 : vector<1x2x128xf32> to vector<2x128xf32>
    %20 = vector.shape_cast %17 : vector<2x128xf32> to vector<1x2x128xf32>
    tpu.vector_store %arg6[%c0_12, %c0_13, %c0_14], %20 {strides = array<i32>} : memref<1x2x128xf32, #tpu.memory_space<vmem>>, vector<1x2x128xf32>,
    return
  }
  func.func @transform_0(%arg0: i32) -> (i32, i32) {
    %c0_i32 = arith.constant 0 : i32
    %c0_i32_0 = arith.constant 0 : i32
    return %arg0, %c0_i32 : i32, i32
  }
  func.func @transform_1(%arg0: i32) -> (i32, i32) {
    %c0_i32 = arith.constant 0 : i32
    %c0_i32_0 = arith.constant 0 : i32
    %c0_i32_1 = arith.constant 0 : i32
    return %c0_i32, %c0_i32_0 : i32, i32
  }
  func.func @transform_2(%arg0: i32) -> (i32, i32) {
    %c0_i32 = arith.constant 0 : i32
    %c0_i32_0 = arith.constant 0 : i32
    %c0_i32_1 = arith.constant 0 : i32
    return %c0_i32, %c0_i32_0 : i32, i32
  }
  func.func @transform_3(%arg0: i32) -> (i32, i32) {
    %c0_i32 = arith.constant 0 : i32
    %c0_i32_0 = arith.constant 0 : i32
    %c0_i32_1 = arith.constant 0 : i32
    return %c0_i32, %c0_i32_0 : i32, i32
  }
  func.func @transform_4(%arg0: i32) -> (i32, i32) {
    %c0_i32 = arith.constant 0 : i32
    %c0_i32_0 = arith.constant 0 : i32
    return %arg0, %c0_i32 : i32, i32
  }
  func.func @transform_5(%arg0: i32) -> (i32, i32, i32) {
    %c0_i32 = arith.constant 0 : i32
    %c0_i32_0 = arith.constant 0 : i32
    %c0_i32_1 = arith.constant 0 : i32
    return %arg0, %c0_i32, %c0_i32_0 : i32, i32, i32
  }
}

module attributes {stable_mosaic.version = 11 : i64} {
  func.func @_last_layer_pool_kernel(%arg0: i32, %arg1: i32, %arg2: memref<1x16x128xf32, #tpu.memory_space<vmem>>, %arg3: memref<1x128xf32, #tpu.memory_space<vmem>>, %arg4: memref<1x128xf32, #tpu.memory_space<vmem>>, %arg5: memref<128x1024xf32, #tpu.memory_space<vmem>>, %arg6: memref<1x4x1024xf32, #tpu.memory_space<vmem>>) attributes {dimension_semantics = [#tpu.dimension_semantics<parallel>, #tpu.dimension_semantics<arbitrary>], iteration_bounds = array<i64: 2, 1>, scalar_prefetch = 0 : i64, scratch_operands = 0 : i64, tpu.core_type = #tpu.core_type<tc>, window_params = [{transform_indices = @transform_0, window_bounds = array<i64: 1, 16, 128>}, {pipeline_mode = #tpu.pipeline_mode<synchronous>, transform_indices = @transform_1, window_bounds = array<i64: 1, 128>}, {pipeline_mode = #tpu.pipeline_mode<synchronous>, transform_indices = @transform_2, window_bounds = array<i64: 1, 128>}, {pipeline_mode = #tpu.pipeline_mode<synchronous>, transform_indices = @transform_3, window_bounds = array<i64: 128, 1024>}, {transform_indices = @transform_4, window_bounds = array<i64: 1, 4, 1024>}]} {
    %c0 = arith.constant 0 : index
    %c0_0 = arith.constant 0 : index
    %c0_1 = arith.constant 0 : index
    %0 = vector.load %arg2[%c0, %c0_0, %c0_1] : memref<1x16x128xf32, #tpu.memory_space<vmem>>, vector<1x16x128xf32>
    %1 = vector.shape_cast %0 : vector<1x16x128xf32> to vector<16x128xf32>
    %c0_2 = arith.constant 0 : index
    %c0_3 = arith.constant 0 : index
    %2 = vector.load %arg3[%c0_2, %c0_3] : memref<1x128xf32, #tpu.memory_space<vmem>>, vector<1x128xf32>
    %3 = vector.broadcast %2 : vector<1x128xf32> to vector<16x128xf32>
    %4 = arith.mulf %1, %3 : vector<16x128xf32>
    %c0_4 = arith.constant 0 : index
    %c0_5 = arith.constant 0 : index
    %5 = vector.load %arg4[%c0_4, %c0_5] : memref<1x128xf32, #tpu.memory_space<vmem>>, vector<1x128xf32>
    %6 = vector.broadcast %5 : vector<1x128xf32> to vector<16x128xf32>
    %7 = arith.addf %4, %6 : vector<16x128xf32>
    %cst = arith.constant 0.000000e+00 : f32
    %8 = vector.broadcast %cst : f32 to vector<16x128xf32>
    %9 = arith.maximumf %7, %8 : vector<16x128xf32>
    %c0_6 = arith.constant 0 : index
    %c0_7 = arith.constant 0 : index
    %10 = vector.load %arg5[%c0_6, %c0_7] : memref<128x1024xf32, #tpu.memory_space<vmem>>, vector<128x1024xf32>
    %cst_8 = arith.constant dense<0.000000e+00> : vector<16x1024xf32>
    %11 = tpu.matmul %9, %10, %cst_8 {dimension_numbers = #tpu.dot_dimension_numbers<[1], [0], [0], [1], [0, 0, 1, 1], [], []>} : vector<16x128xf32>, vector<128x1024xf32>, vector<16x1024xf32> -> vector<16x1024xf32>
    %cst_9 = arith.constant dense<0xFF800000> : vector<1024xf32>
    %12 = vector.multi_reduction <maximumf>, %11, %cst_9 [0] : vector<16x1024xf32> to vector<1024xf32>
    %13 = vector.shape_cast %12 : vector<1024xf32> to vector<1x1024xf32>
    %cst_10 = arith.constant dense<0x7F800000> : vector<1024xf32>
    %14 = vector.multi_reduction <minimumf>, %11, %cst_10 [0] : vector<16x1024xf32> to vector<1024xf32>
    %15 = vector.shape_cast %14 : vector<1024xf32> to vector<1x1024xf32>
    %cst_11 = arith.constant dense<0.000000e+00> : vector<1024xf32>
    %16 = vector.multi_reduction <add>, %11, %cst_11 [0] : vector<16x1024xf32> to vector<1024xf32>
    %17 = vector.shape_cast %16 : vector<1024xf32> to vector<1x1024xf32>
    %18 = arith.mulf %11, %11 : vector<16x1024xf32>
    %cst_12 = arith.constant dense<0.000000e+00> : vector<1024xf32>
    %19 = vector.multi_reduction <add>, %18, %cst_12 [0] : vector<16x1024xf32> to vector<1024xf32>
    %20 = vector.shape_cast %19 : vector<1024xf32> to vector<1x1024xf32>
    %c0_i32 = arith.constant 0 : i32
    %21 = arith.cmpi eq, %arg1, %c0_i32 : i32
    %22 = arith.extui %21 : i1 to i32
    %c0_i32_13 = arith.constant 0 : i32
    %23 = arith.cmpi ne, %22, %c0_i32_13 : i32
    scf.if %23 {
      %c0_16 = arith.constant 0 : index
      %c0_17 = arith.constant 0 : index
      %c0_18 = arith.constant 0 : index
      %27 = vector.load %arg6[%c0_16, %c0_17, %c0_18] : memref<1x4x1024xf32, #tpu.memory_space<vmem>>, vector<1x1x1024xf32>
      %28 = vector.shape_cast %27 : vector<1x1x1024xf32> to vector<1x1024xf32>
      %29 = vector.shape_cast %13 : vector<1x1024xf32> to vector<1x1x1024xf32>
      tpu.vector_store %arg6[%c0_16, %c0_17, %c0_18], %29 {strides = array<i32>} : memref<1x4x1024xf32, #tpu.memory_space<vmem>>, vector<1x1x1024xf32>,
      %c0_19 = arith.constant 0 : index
      %c1 = arith.constant 1 : index
      %c0_20 = arith.constant 0 : index
      %30 = vector.load %arg6[%c0_19, %c1, %c0_20] : memref<1x4x1024xf32, #tpu.memory_space<vmem>>, vector<1x1x1024xf32>
      %31 = vector.shape_cast %30 : vector<1x1x1024xf32> to vector<1x1024xf32>
      %32 = vector.shape_cast %15 : vector<1x1024xf32> to vector<1x1x1024xf32>
      tpu.vector_store %arg6[%c0_19, %c1, %c0_20], %32 {strides = array<i32>} : memref<1x4x1024xf32, #tpu.memory_space<vmem>>, vector<1x1x1024xf32>,
      %c0_21 = arith.constant 0 : index
      %c2 = arith.constant 2 : index
      %c0_22 = arith.constant 0 : index
      %33 = vector.load %arg6[%c0_21, %c2, %c0_22] : memref<1x4x1024xf32, #tpu.memory_space<vmem>>, vector<1x1x1024xf32>
      %34 = vector.shape_cast %33 : vector<1x1x1024xf32> to vector<1x1024xf32>
      %35 = vector.shape_cast %17 : vector<1x1024xf32> to vector<1x1x1024xf32>
      tpu.vector_store %arg6[%c0_21, %c2, %c0_22], %35 {strides = array<i32>} : memref<1x4x1024xf32, #tpu.memory_space<vmem>>, vector<1x1x1024xf32>,
      %c0_23 = arith.constant 0 : index
      %c3 = arith.constant 3 : index
      %c0_24 = arith.constant 0 : index
      %36 = vector.load %arg6[%c0_23, %c3, %c0_24] : memref<1x4x1024xf32, #tpu.memory_space<vmem>>, vector<1x1x1024xf32>
      %37 = vector.shape_cast %36 : vector<1x1x1024xf32> to vector<1x1024xf32>
      %38 = vector.shape_cast %20 : vector<1x1024xf32> to vector<1x1x1024xf32>
      tpu.vector_store %arg6[%c0_23, %c3, %c0_24], %38 {strides = array<i32>} : memref<1x4x1024xf32, #tpu.memory_space<vmem>>, vector<1x1x1024xf32>,
    } else {
    }
    %c0_i32_14 = arith.constant 0 : i32
    %24 = arith.cmpi ne, %arg1, %c0_i32_14 : i32
    %25 = arith.extui %24 : i1 to i32
    %c0_i32_15 = arith.constant 0 : i32
    %26 = arith.cmpi ne, %25, %c0_i32_15 : i32
    scf.if %26 {
      %c0_16 = arith.constant 0 : index
      %c0_17 = arith.constant 0 : index
      %c0_18 = arith.constant 0 : index
      %27 = vector.load %arg6[%c0_16, %c0_17, %c0_18] : memref<1x4x1024xf32, #tpu.memory_space<vmem>>, vector<1x1x1024xf32>
      %28 = vector.shape_cast %27 : vector<1x1x1024xf32> to vector<1x1024xf32>
      %29 = arith.maximumf %28, %13 : vector<1x1024xf32>
      %c0_19 = arith.constant 0 : index
      %c0_20 = arith.constant 0 : index
      %c0_21 = arith.constant 0 : index
      %30 = vector.load %arg6[%c0_19, %c0_20, %c0_21] : memref<1x4x1024xf32, #tpu.memory_space<vmem>>, vector<1x1x1024xf32>
      %31 = vector.shape_cast %30 : vector<1x1x1024xf32> to vector<1x1024xf32>
      %32 = vector.shape_cast %29 : vector<1x1024xf32> to vector<1x1x1024xf32>
      tpu.vector_store %arg6[%c0_19, %c0_20, %c0_21], %32 {strides = array<i32>} : memref<1x4x1024xf32, #tpu.memory_space<vmem>>, vector<1x1x1024xf32>,
      %c0_22 = arith.constant 0 : index
      %c1 = arith.constant 1 : index
      %c0_23 = arith.constant 0 : index
      %33 = vector.load %arg6[%c0_22, %c1, %c0_23] : memref<1x4x1024xf32, #tpu.memory_space<vmem>>, vector<1x1x1024xf32>
      %34 = vector.shape_cast %33 : vector<1x1x1024xf32> to vector<1x1024xf32>
      %35 = arith.minimumf %34, %15 : vector<1x1024xf32>
      %c0_24 = arith.constant 0 : index
      %c1_25 = arith.constant 1 : index
      %c0_26 = arith.constant 0 : index
      %36 = vector.load %arg6[%c0_24, %c1_25, %c0_26] : memref<1x4x1024xf32, #tpu.memory_space<vmem>>, vector<1x1x1024xf32>
      %37 = vector.shape_cast %36 : vector<1x1x1024xf32> to vector<1x1024xf32>
      %38 = vector.shape_cast %35 : vector<1x1024xf32> to vector<1x1x1024xf32>
      tpu.vector_store %arg6[%c0_24, %c1_25, %c0_26], %38 {strides = array<i32>} : memref<1x4x1024xf32, #tpu.memory_space<vmem>>, vector<1x1x1024xf32>,
      %c0_27 = arith.constant 0 : index
      %c2 = arith.constant 2 : index
      %c0_28 = arith.constant 0 : index
      %39 = vector.load %arg6[%c0_27, %c2, %c0_28] : memref<1x4x1024xf32, #tpu.memory_space<vmem>>, vector<1x1x1024xf32>
      %40 = vector.shape_cast %39 : vector<1x1x1024xf32> to vector<1x1024xf32>
      %41 = arith.addf %40, %17 : vector<1x1024xf32>
      %c0_29 = arith.constant 0 : index
      %c2_30 = arith.constant 2 : index
      %c0_31 = arith.constant 0 : index
      %42 = vector.load %arg6[%c0_29, %c2_30, %c0_31] : memref<1x4x1024xf32, #tpu.memory_space<vmem>>, vector<1x1x1024xf32>
      %43 = vector.shape_cast %42 : vector<1x1x1024xf32> to vector<1x1024xf32>
      %44 = vector.shape_cast %41 : vector<1x1024xf32> to vector<1x1x1024xf32>
      tpu.vector_store %arg6[%c0_29, %c2_30, %c0_31], %44 {strides = array<i32>} : memref<1x4x1024xf32, #tpu.memory_space<vmem>>, vector<1x1x1024xf32>,
      %c0_32 = arith.constant 0 : index
      %c3 = arith.constant 3 : index
      %c0_33 = arith.constant 0 : index
      %45 = vector.load %arg6[%c0_32, %c3, %c0_33] : memref<1x4x1024xf32, #tpu.memory_space<vmem>>, vector<1x1x1024xf32>
      %46 = vector.shape_cast %45 : vector<1x1x1024xf32> to vector<1x1024xf32>
      %47 = arith.addf %46, %20 : vector<1x1024xf32>
      %c0_34 = arith.constant 0 : index
      %c3_35 = arith.constant 3 : index
      %c0_36 = arith.constant 0 : index
      %48 = vector.load %arg6[%c0_34, %c3_35, %c0_36] : memref<1x4x1024xf32, #tpu.memory_space<vmem>>, vector<1x1x1024xf32>
      %49 = vector.shape_cast %48 : vector<1x1x1024xf32> to vector<1x1024xf32>
      %50 = vector.shape_cast %47 : vector<1x1024xf32> to vector<1x1x1024xf32>
      tpu.vector_store %arg6[%c0_34, %c3_35, %c0_36], %50 {strides = array<i32>} : memref<1x4x1024xf32, #tpu.memory_space<vmem>>, vector<1x1x1024xf32>,
    } else {
    }
    return
  }
  func.func @transform_0(%arg0: i32, %arg1: i32) -> (i32, i32, i32) {
    %c0_i32 = arith.constant 0 : i32
    %c0_i32_0 = arith.constant 0 : i32
    return %arg0, %arg1, %c0_i32 : i32, i32, i32
  }
  func.func @transform_1(%arg0: i32, %arg1: i32) -> (i32, i32) {
    %c0_i32 = arith.constant 0 : i32
    %c0_i32_0 = arith.constant 0 : i32
    %c0_i32_1 = arith.constant 0 : i32
    return %c0_i32, %c0_i32_0 : i32, i32
  }
  func.func @transform_2(%arg0: i32, %arg1: i32) -> (i32, i32) {
    %c0_i32 = arith.constant 0 : i32
    %c0_i32_0 = arith.constant 0 : i32
    %c0_i32_1 = arith.constant 0 : i32
    return %c0_i32, %c0_i32_0 : i32, i32
  }
  func.func @transform_3(%arg0: i32, %arg1: i32) -> (i32, i32) {
    %c0_i32 = arith.constant 0 : i32
    %c0_i32_0 = arith.constant 0 : i32
    %c0_i32_1 = arith.constant 0 : i32
    return %c0_i32, %c0_i32_0 : i32, i32
  }
  func.func @transform_4(%arg0: i32, %arg1: i32) -> (i32, i32, i32) {
    %c0_i32 = arith.constant 0 : i32
    %c0_i32_0 = arith.constant 0 : i32
    %c0_i32_1 = arith.constant 0 : i32
    return %arg0, %c0_i32, %c0_i32_0 : i32, i32, i32
  }
}

</mosaic_0001>

<llo_original>
// kernel: pointnet_encoder.5
$region0: #{pointnet_encoder.5}
  #allocation0 [shape = 'u32[]', space=smem, size = 0x4, offset = 0x4, fixed_abs, tag = 'smem constant byte address 0x4 - core index']
  #allocation1 [shape = 'u32[144,128]{1,0:T(1,128)}', space=vmem, size = 0x12000, scoped, tag = 'internal scratch']
  %s0 = inlined_call_operand.vmem [shape: f32[32,4], index: 0, kind: input, shape index: {}]
  %s1 = inlined_call_operand.vmem [shape: f32[3,64], index: 1, kind: input, shape index: {}]
  %s2 = inlined_call_operand.vmem [shape: f32[32,64], index: 2, kind: output, shape index: {0}]
  %s3 = inlined_call_operand.vmem [shape: f32[1,2,64], index: 3, kind: output, shape index: {1}]
  %4 = xla_tuple %s2, %s3
  %s5 = sld [smem:[#allocation0]]
  $region26: #{pointnet_encoder.5} parent=0
    _
  %s7 = ssub.s32 1, %s5
  %s8 = scalar_select 0, %s7, %s5
  // Predicated region
  $region2: #{pointnet_encoder.5} parent=0 // pred_check
    _
  $region3: #{pointnet_encoder.5} parent=0 // pred_check_branch
    %10 = sbr.rel (0) target = $region5
  $region4: #{pointnet_encoder.5} parent=0 // pred_region
    _
  $region5: #{pointnet_encoder.5} parent=0 // pred_fallthru
    _
  // Predicated region
  $region6: #{pointnet_encoder.5} parent=0 // pred_check
    _
  $region7: #{pointnet_encoder.5} parent=0 // pred_check_branch
    %12 = sbr.rel (0) target = $region9
  $region8: #{pointnet_encoder.5} parent=0 // pred_region
    _
  $region9: #{pointnet_encoder.5} parent=0 // pred_fallthru
    _
  %v13 = vld [vmem:[%s0] sm:$0xff]
  %v14 = vld [vmem:[%s0 + $0x8] sm:$0xff]
  %v15 = vld [vmem:[%s0 + $0x10] sm:$0xff]
  %v16 = vld [vmem:[%s0 + $0x18] sm:$0xff]
  %v17 = vld [vmem:[%s1] sm:$0x7]
  %19 = vset.pattern.permute.xlu0 0
  %20 = vperm.xlu0 %19, %v13
  %v21 = vpop.permute.xlu0 %20
  %24 = vset.pattern.permute.xlu0 0
  %25 = vperm.xlu0 %24, %v14
  %v26 = vpop.permute.xlu0 %25
  %29 = vset.pattern.permute.xlu0 0
  %30 = vperm.xlu0 %29, %v15
  %v31 = vpop.permute.xlu0 %30
  %34 = vset.pattern.permute.xlu0 0
  %35 = vperm.xlu0 %34, %v16
  %v36 = vpop.permute.xlu0 %35
  %v38 = vlaneseq
  %v39 = vshrl.u32 %v38, 7
  %v40 = vsub.s32 0, %v39
  %v41 = vrot.slane %v17, %v40
  %v42 = vmul.f32 %v21, %v41
  %v43 = vmul.f32 %v26, %v41
  %v44 = vmul.f32 %v31, %v41
  %v45 = vmul.f32 %v36, %v41
  %46 = vset.pattern.permute.xlu0 1
  %47 = vperm.xlu0 %46, %v13
  %v48 = vpop.permute.xlu0 %47
  %50 = vset.pattern.permute.xlu0 1
  %51 = vperm.xlu0 %50, %v14
  %v52 = vpop.permute.xlu0 %51
  %54 = vset.pattern.permute.xlu0 1
  %55 = vperm.xlu0 %54, %v15
  %v56 = vpop.permute.xlu0 %55
  %58 = vset.pattern.permute.xlu0 1
  %59 = vperm.xlu0 %58, %v16
  %v60 = vpop.permute.xlu0 %59
  %v62 = vlaneseq
  %v63 = vshrl.u32 %v62, 7
  %v64 = vsub.s32 1, %v63
  %v65 = vrot.slane %v17, %v64
  %v66 = vmul.f32 %v48, %v65
  %v67 = vmul.f32 %v52, %v65
  %v68 = vmul.f32 %v56, %v65
  %v69 = vmul.f32 %v60, %v65
  %v70 = vadd.f32 %v42, %v66
  %v71 = vadd.f32 %v43, %v67
  %v72 = vadd.f32 %v44, %v68
  %v73 = vadd.f32 %v45, %v69
  %74 = vset.pattern.permute.xlu0 2
  %75 = vperm.xlu0 %74, %v13
  %v76 = vpop.permute.xlu0 %75
  %78 = vset.pattern.permute.xlu0 2
  %79 = vperm.xlu0 %78, %v14
  %v80 = vpop.permute.xlu0 %79
  %82 = vset.pattern.permute.xlu0 2
  %83 = vperm.xlu0 %82, %v15
  %v84 = vpop.permute.xlu0 %83
  %86 = vset.pattern.permute.xlu0 2
  %87 = vperm.xlu0 %86, %v16
  %v88 = vpop.permute.xlu0 %87
  %v90 = vlaneseq
  %v91 = vshrl.u32 %v90, 7
  %v92 = vsub.s32 2, %v91
  %v93 = vrot.slane %v17, %v92
  %v94 = vmul.f32 %v76, %v93
  %v95 = vmul.f32 %v80, %v93
  %v96 = vmul.f32 %v84, %v93
  %v97 = vmul.f32 %v88, %v93
  %v98 = vadd.f32 %v70, %v94
  %v99 = vadd.f32 %v71, %v95
  %v100 = vadd.f32 %v72, %v96
  %v101 = vadd.f32 %v73, %v97
  %vm102 = vcmask 523264
  %103 = vst.msk [vmem:[%s2] sm:$0xff] %vm102, %v98
  %104 = vst.msk [vmem:[%s2 + $0x8] sm:$0xff] %vm102, %v99
  %105 = vst.msk [vmem:[%s2 + $0x10] sm:$0xff] %vm102, %v100
  %106 = vst.msk [vmem:[%s2 + $0x18] sm:$0xff] %vm102, %v101
  %v107 = vsel %vm102, %v98, 0.0
  %v108 = vsel %vm102, %v99, 0.0
  %v109 = vadd.f32 %v107, %v108
  %v110 = vsel %vm102, %v100, 0.0
  %v111 = vadd.f32 %v109, %v110
  %v112 = vsel %vm102, %v101, 0.0
  %v113 = vadd.f32 %v111, %v112
  %v114 = vrot.slane %v113, 4
  %v115 = vadd.f32 %v113, %v114
  %v116 = vrot.slane %v115, 2
  %v117 = vadd.f32 %v115, %v116
  %v118 = vrot.slane %v117, 1
  %v119 = vadd.f32 %v117, %v118
  %v120 = vmul.f32 %v98, %v98
  %v121 = vmul.f32 %v99, %v99
  %v122 = vmul.f32 %v100, %v100
  %v123 = vmul.f32 %v101, %v101
  %v124 = vsel %vm102, %v120, 0.0
  %v125 = vsel %vm102, %v121, 0.0
  %v126 = vadd.f32 %v124, %v125
  %v127 = vsel %vm102, %v122, 0.0
  %v128 = vadd.f32 %v126, %v127
  %v129 = vsel %vm102, %v123, 0.0
  %v130 = vadd.f32 %v128, %v129
  %v131 = vrot.slane %v130, 4
  %v132 = vadd.f32 %v130, %v131
  %v133 = vrot.slane %v132, 2
  %v134 = vadd.f32 %v132, %v133
  %v135 = vrot.slane %v134, 1
  %v136 = vadd.f32 %v134, %v135
  %vm137 = vcmask 1040384
  %v138 = vsel %vm137, %v119, %v136
  %vm139 = vcmask 517120
  %140 = vst.msk [vmem:[%s3] sm:$0x3] %vm139, %v138
  // Predicated region
  $region10: #{pointnet_encoder.5} parent=0 // pred_check
    _
  $region11: #{pointnet_encoder.5} parent=0 // pred_check_branch
    %142 = sbr.rel (0) target = $region13
  $region12: #{pointnet_encoder.5} parent=0 // pred_region
    _
  $region13: #{pointnet_encoder.5} parent=0 // pred_fallthru
    _
  // Predicated region
  $region14: #{pointnet_encoder.5} parent=0 // pred_check
    _
  $region15: #{pointnet_encoder.5} parent=0 // pred_check_branch
    %144 = sbr.rel (0) target = $region17
  $region16: #{pointnet_encoder.5} parent=0 // pred_region
    _
  $region17: #{pointnet_encoder.5} parent=0 // pred_fallthru
    _
  // Predicated region
  $region18: #{pointnet_encoder.5} parent=0 // pred_check
    _
  $region19: #{pointnet_encoder.5} parent=0 // pred_check_branch
    %146 = sbr.rel (0) target = $region21
  $region20: #{pointnet_encoder.5} parent=0 // pred_region
    _
  $region21: #{pointnet_encoder.5} parent=0 // pred_fallthru
    _
  // Predicated region
  $region22: #{pointnet_encoder.5} parent=0 // pred_check
    _
  $region23: #{pointnet_encoder.5} parent=0 // pred_check_branch
    %148 = sbr.rel (0) target = $region25
  $region24: #{pointnet_encoder.5} parent=0 // pred_region
    _
  $region25: #{pointnet_encoder.5} parent=0 // pred_fallthru
    _

// kernel: pointnet_encoder.6
$region0: #{pointnet_encoder.6}
  #allocation0 [shape = 'u32[]', space=smem, size = 0x4, offset = 0x4, fixed_abs, tag = 'smem constant byte address 0x4 - core index']
  #allocation1 [shape = 'u32[144,128]{1,0:T(1,128)}', space=vmem, size = 0x12000, scoped, tag = 'internal scratch']
  %s0 = inlined_call_operand.vmem [shape: f32[32,64], index: 0, kind: input, shape index: {}]
  %s1 = inlined_call_operand.vmem [shape: f32[1,64], index: 1, kind: input, shape index: {}]
  %s2 = inlined_call_operand.vmem [shape: f32[1,64], index: 2, kind: input, shape index: {}]
  %s3 = inlined_call_operand.vmem [shape: f32[64,64], index: 3, kind: input, shape index: {}]
  %s4 = inlined_call_operand.vmem [shape: f32[32,64], index: 4, kind: output, shape index: {0}]
  %s5 = inlined_call_operand.vmem [shape: f32[1,2,64], index: 5, kind: output, shape index: {1}]
  %6 = xla_tuple %s4, %s5
  %s7 = sld [smem:[#allocation0]]
  $region34: #{pointnet_encoder.6} parent=0
    _
  %s9 = ssub.s32 1, %s7
  %s10 = scalar_select 0, %s9, %s7
  // Predicated region
  $region2: #{pointnet_encoder.6} parent=0 // pred_check
    _
  $region3: #{pointnet_encoder.6} parent=0 // pred_check_branch
    %12 = sbr.rel (0) target = $region5
  $region4: #{pointnet_encoder.6} parent=0 // pred_region
    _
  $region5: #{pointnet_encoder.6} parent=0 // pred_fallthru
    _
  // Predicated region
  $region6: #{pointnet_encoder.6} parent=0 // pred_check
    _
  $region7: #{pointnet_encoder.6} parent=0 // pred_check_branch
    %14 = sbr.rel (0) target = $region9
  $region8: #{pointnet_encoder.6} parent=0 // pred_region
    _
  $region9: #{pointnet_encoder.6} parent=0 // pred_fallthru
    _
  // Predicated region
  $region10: #{pointnet_encoder.6} parent=0 // pred_check
    _
  $region11: #{pointnet_encoder.6} parent=0 // pred_check_branch
    %16 = sbr.rel (0) target = $region13
  $region12: #{pointnet_encoder.6} parent=0 // pred_region
    _
  $region13: #{pointnet_encoder.6} parent=0 // pred_fallthru
    _
  // Predicated region
  $region14: #{pointnet_encoder.6} parent=0 // pred_check
    _
  $region15: #{pointnet_encoder.6} parent=0 // pred_check_branch
    %18 = sbr.rel (0) target = $region17
  $region16: #{pointnet_encoder.6} parent=0 // pred_region
    _
  $region17: #{pointnet_encoder.6} parent=0 // pred_fallthru
    _
  %v19 = vld [vmem:[%s0] sm:$0xff]
  %v20 = vld [vmem:[%s0 + $0x8] sm:$0xff]
  %v21 = vld [vmem:[%s0 + $0x10] sm:$0xff]
  %v22 = vld [vmem:[%s0 + $0x18] sm:$0xff]
  %v23 = vld [vmem:[%s1] sm:$0x1]
  %v25 = vlaneseq
  %v26 = vshrl.u32 %v25, 7
  %v27 = vsub.s32 0, %v26
  %v28 = vrot.slane %v23, %v27
  %v30 = vmul.f32 %v19, %v28
  %v31 = vmul.f32 %v20, %v28
  %v32 = vmul.f32 %v21, %v28
  %v33 = vmul.f32 %v22, %v28
  %v34 = vld [vmem:[%s2] sm:$0x1]
  %v36 = vlaneseq
  %v37 = vshrl.u32 %v36, 7
  %v38 = vsub.s32 0, %v37
  %v39 = vrot.slane %v34, %v38
  %v41 = vadd.f32 %v30, %v39
  %v42 = vadd.f32 %v31, %v39
  %v43 = vadd.f32 %v32, %v39
  %v44 = vadd.f32 %v33, %v39
  %v45 = vmax.f32 %v41, 0.0
  %v46 = vmax.f32 %v42, 0.0
  %v47 = vmax.f32 %v43, 0.0
  %v48 = vmax.f32 %v44, 0.0
  %v49 = vld [vmem:[%s3] sm:$0xff]
  %v50 = vld [vmem:[%s3 + $0x8] sm:$0xff]
  %v51 = vld [vmem:[%s3 + $0x10] sm:$0xff]
  %v52 = vld [vmem:[%s3 + $0x18] sm:$0xff]
  %v53 = vld [vmem:[%s3 + $0x20] sm:$0xff]
  %v54 = vld [vmem:[%s3 + $0x28] sm:$0xff]
  %v55 = vld [vmem:[%s3 + $0x30] sm:$0xff]
  %v56 = vld [vmem:[%s3 + $0x38] sm:$0xff]
  %vm57 = vcmask 523264
  %v59 = vsel %vm57, %v45, 0
  %v62 = vsel %vm57, %v46, 0
  %v65 = vsel %vm57, %v47, 0
  %v68 = vsel %vm57, %v48, 0
  %70 = vmatprep.subr.mxu0 0.0
  %71 = vmatpush1.msra.mxu0 %v49
  %72 = vmatprep.subr.mxu0 0.0
  %73 = vmatpush1.msra.mxu0 %v50
  %74 = vmatprep.subr.mxu0 0.0
  %75 = vmatpush1.msra.mxu0 %v51
  %76 = vmatprep.subr.mxu0 0.0
  %77 = vmatpush1.msra.mxu0 %v52
  %78 = vmatprep.subr.mxu0 0.0
  %79 = vmatpush1.msra.mxu0 %v53
  %80 = vmatprep.subr.mxu0 0.0
  %81 = vmatpush1.msra.mxu0 %v54
  %82 = vmatprep.subr.mxu0 0.0
  %83 = vmatpush1.msra.mxu0 %v55
  %84 = vmatprep.subr.mxu0 0.0
  %85 = vmatpush1.msra.mxu0 %v56
  %86 = vmatprep.subr.mxu0 0.0
  %87 = vmatpush1.msra.mxu0 0.0
  %88 = vmatprep.subr.mxu0 0.0
  %89 = vmatpush1.msra.mxu0 0.0
  %90 = vmatprep.subr.mxu0 0.0
  %91 = vmatpush1.msra.mxu0 0.0
  %92 = vmatprep.subr.mxu0 0.0
  %93 = vmatpush1.msra.mxu0 0.0
  %94 = vmatprep.subr.mxu0 0.0
  %95 = vmatpush1.msra.mxu0 0.0
  %96 = vmatprep.subr.mxu0 0.0
  %97 = vmatpush1.msra.mxu0 0.0
  %98 = vmatprep.subr.mxu0 0.0
  %99 = vmatpush1.msra.mxu0 0.0
  %100 = vmatprep.subr.mxu0 0.0
  %101 = vmatpush1.msra.mxu0 0.0
  %102 = vmatprep.subr.mxu0 0.0
  %103 = vmatpush1.msra.mxu0 0.0
  %104 = vmatprep.subr.mxu0 0.0
  %105 = vmatpush1.msra.mxu0 0.0
  %106 = vmatprep.subr.mxu0 0.0
  %107 = vmatpush1.msra.mxu0 0.0
  %108 = vmatprep.subr.mxu0 0.0
  %109 = vmatpush1.msra.mxu0 0.0
  %110 = vmatprep.subr.mxu0 0.0
  %111 = vmatpush1.msra.mxu0 0.0
  %112 = vmatprep.subr.mxu0 0.0
  %113 = vmatpush1.msra.mxu0 0.0
  %114 = vmatprep.subr.mxu0 0.0
  %115 = vmatpush1.msra.mxu0 0.0
  %116 = vmatprep.subr.mxu0 0.0
  %117 = vmatpush1.msra.mxu0 0.0
  %118 = vmatprep.subr.mxu0 0.0
  %119 = vmatpush1.msra.mxu0 0.0
  %120 = vmatprep.subr.mxu0 0.0
  %121 = vmatpush1.msra.mxu0 0.0
  %122 = vmatprep.subr.mxu0 0.0
  %123 = vmatpush1.msra.mxu0 0.0
  %124 = vmatprep.subr.mxu0 0.0
  %125 = vmatpush1.msra.mxu0 0.0
  %126 = vmatprep.subr.mxu0 0.0
  %127 = vmatpush1.msra.mxu0 0.0
  %128 = vmatprep.subr.mxu0 0.0
  %129 = vmatpush1.msra.mxu0 0.0
  %130 = vmatprep.subr.mxu0 0.0
  %131 = vmatpush1.msra.mxu0 0.0
  %132 = vmatprep.subr.mxu0 0.0
  %133 = vmatpush1.msra.mxu0 0.0
  %134 = vmatprep.mubr.f32.mxu0 0.0
  %135 = vmatmul.mubr.f32.gmra.mrb[0].mxu0 %v59
  %v136 = vpop.f32.mrb[0].mxu0
  %v137 = vadd.f32 0.0, %v136
  %v138 = vpop.f32.mrb[0].mxu0
  %139 = vmatprep.mubr.f32.mxu0 0.0
  %140 = vmatmul.mubr.f32.gmra.mrb[0].mxu0 %v62
  %v141 = vpop.f32.mrb[0].mxu0
  %v142 = vadd.f32 0.0, %v141
  %v143 = vpop.f32.mrb[0].mxu0
  %144 = vmatprep.mubr.f32.mxu0 0.0
  %145 = vmatmul.mubr.f32.gmra.mrb[0].mxu0 %v65
  %v146 = vpop.f32.mrb[0].mxu0
  %v147 = vadd.f32 0.0, %v146
  %v148 = vpop.f32.mrb[0].mxu0
  %149 = vmatprep.mubr.f32.mxu0 0.0
  %150 = vmatmul.mubr.f32.gmra.mrb[0].mxu0 %v68
  %v151 = vpop.f32.mrb[0].mxu0
  %v152 = vadd.f32 0.0, %v151
  %v153 = vpop.f32.mrb[0].mxu0
  %154 = vdwg.mxu0
  %155 = vst.msk [vmem:[%s4] sm:$0xff] %vm57, %v137
  %156 = vst.msk [vmem:[%s4 + $0x8] sm:$0xff] %vm57, %v142
  %157 = vst.msk [vmem:[%s4 + $0x10] sm:$0xff] %vm57, %v147
  %158 = vst.msk [vmem:[%s4 + $0x18] sm:$0xff] %vm57, %v152
  %v159 = vsel %vm57, %v137, 0.0
  %v160 = vsel %vm57, %v142, 0.0
  %v161 = vadd.f32 %v159, %v160
  %v162 = vsel %vm57, %v147, 0.0
  %v163 = vadd.f32 %v161, %v162
  %v164 = vsel %vm57, %v152, 0.0
  %v165 = vadd.f32 %v163, %v164
  %v166 = vrot.slane %v165, 4
  %v167 = vadd.f32 %v165, %v166
  %v168 = vrot.slane %v167, 2
  %v169 = vadd.f32 %v167, %v168
  %v170 = vrot.slane %v169, 1
  %v171 = vadd.f32 %v169, %v170
  %v172 = vmul.f32 %v137, %v137
  %v173 = vmul.f32 %v142, %v142
  %v174 = vmul.f32 %v147, %v147
  %v175 = vmul.f32 %v152, %v152
  %v176 = vsel %vm57, %v172, 0.0
  %v177 = vsel %vm57, %v173, 0.0
  %v178 = vadd.f32 %v176, %v177
  %v179 = vsel %vm57, %v174, 0.0
  %v180 = vadd.f32 %v178, %v179
  %v181 = vsel %vm57, %v175, 0.0
  %v182 = vadd.f32 %v180, %v181
  %v183 = vrot.slane %v182, 4
  %v184 = vadd.f32 %v182, %v183
  %v185 = vrot.slane %v184, 2
  %v186 = vadd.f32 %v184, %v185
  %v187 = vrot.slane %v186, 1
  %v188 = vadd.f32 %v186, %v187
  %vm189 = vcmask 1040384
  %v190 = vsel %vm189, %v171, %v188
  %vm191 = vcmask 517120
  %192 = vst.msk [vmem:[%s5] sm:$0x3] %vm191, %v190
  // Predicated region
  $region18: #{pointnet_encoder.6} parent=0 // pred_check
    _
  $region19: #{pointnet_encoder.6} parent=0 // pred_check_branch
    %194 = sbr.rel (0) target = $region21
  $region20: #{pointnet_encoder.6} parent=0 // pred_region
    _
  $region21: #{pointnet_encoder.6} parent=0 // pred_fallthru
    _
  // Predicated region
  $region22: #{pointnet_encoder.6} parent=0 // pred_check
    _
  $region23: #{pointnet_encoder.6} parent=0 // pred_check_branch
    %196 = sbr.rel (0) target = $region25
  $region24: #{pointnet_encoder.6} parent=0 // pred_region
    _
  $region25: #{pointnet_encoder.6} parent=0 // pred_fallthru
    _
  // Predicated region
  $region26: #{pointnet_encoder.6} parent=0 // pred_check
    _
  $region27: #{pointnet_encoder.6} parent=0 // pred_check_branch
    %198 = sbr.rel (0) target = $region29
  $region28: #{pointnet_encoder.6} parent=0 // pred_region
    _
  $region29: #{pointnet_encoder.6} parent=0 // pred_fallthru
    _
  // Predicated region
  $region30: #{pointnet_encoder.6} parent=0 // pred_check
    _
  $region31: #{pointnet_encoder.6} parent=0 // pred_check_branch
    %200 = sbr.rel (0) target = $region33
  $region32: #{pointnet_encoder.6} parent=0 // pred_region
    _
  $region33: #{pointnet_encoder.6} parent=0 // pred_fallthru
    _

// kernel: pointnet_encoder.8
$region0: #{pointnet_encoder.8}
  #allocation0 [shape = 'u32[]', space=smem, size = 0x4, offset = 0x4, fixed_abs, tag = 'smem constant byte address 0x4 - core index']
  #allocation1 [shape = 'u32[144,128]{1,0:T(1,128)}', space=vmem, size = 0x12000, scoped, tag = 'internal scratch']
  %s0 = inlined_call_operand.vmem [shape: f32[32,64], index: 0, kind: input, shape index: {}]
  %s1 = inlined_call_operand.vmem [shape: f32[1,64], index: 1, kind: input, shape index: {}]
  %s2 = inlined_call_operand.vmem [shape: f32[1,64], index: 2, kind: input, shape index: {}]
  %s3 = inlined_call_operand.vmem [shape: f32[64,128], index: 3, kind: input, shape index: {}]
  %s4 = inlined_call_operand.vmem [shape: f32[32,128], index: 4, kind: output, shape index: {0}]
  %s5 = inlined_call_operand.vmem [shape: f32[1,2,128], index: 5, kind: output, shape index: {1}]
  %6 = xla_tuple %s4, %s5
  %s7 = sld [smem:[#allocation0]]
  $region34: #{pointnet_encoder.8} parent=0
    _
  %s9 = ssub.s32 1, %s7
  %s10 = scalar_select 0, %s9, %s7
  // Predicated region
  $region2: #{pointnet_encoder.8} parent=0 // pred_check
    _
  $region3: #{pointnet_encoder.8} parent=0 // pred_check_branch
    %12 = sbr.rel (0) target = $region5
  $region4: #{pointnet_encoder.8} parent=0 // pred_region
    _
  $region5: #{pointnet_encoder.8} parent=0 // pred_fallthru
    _
  // Predicated region
  $region6: #{pointnet_encoder.8} parent=0 // pred_check
    _
  $region7: #{pointnet_encoder.8} parent=0 // pred_check_branch
    %14 = sbr.rel (0) target = $region9
  $region8: #{pointnet_encoder.8} parent=0 // pred_region
    _
  $region9: #{pointnet_encoder.8} parent=0 // pred_fallthru
    _
  // Predicated region
  $region10: #{pointnet_encoder.8} parent=0 // pred_check
    _
  $region11: #{pointnet_encoder.8} parent=0 // pred_check_branch
    %16 = sbr.rel (0) target = $region13
  $region12: #{pointnet_encoder.8} parent=0 // pred_region
    _
  $region13: #{pointnet_encoder.8} parent=0 // pred_fallthru
    _
  // Predicated region
  $region14: #{pointnet_encoder.8} parent=0 // pred_check
    _
  $region15: #{pointnet_encoder.8} parent=0 // pred_check_branch
    %18 = sbr.rel (0) target = $region17
  $region16: #{pointnet_encoder.8} parent=0 // pred_region
    _
  $region17: #{pointnet_encoder.8} parent=0 // pred_fallthru
    _
  %v19 = vld [vmem:[%s0] sm:$0xff]
  %v20 = vld [vmem:[%s0 + $0x8] sm:$0xff]
  %v21 = vld [vmem:[%s0 + $0x10] sm:$0xff]
  %v22 = vld [vmem:[%s0 + $0x18] sm:$0xff]
  %v23 = vld [vmem:[%s1] sm:$0x1]
  %v25 = vlaneseq
  %v26 = vshrl.u32 %v25, 7
  %v27 = vsub.s32 0, %v26
  %v28 = vrot.slane %v23, %v27
  %v30 = vmul.f32 %v19, %v28
  %v31 = vmul.f32 %v20, %v28
  %v32 = vmul.f32 %v21, %v28
  %v33 = vmul.f32 %v22, %v28
  %v34 = vld [vmem:[%s2] sm:$0x1]
  %v36 = vlaneseq
  %v37 = vshrl.u32 %v36, 7
  %v38 = vsub.s32 0, %v37
  %v39 = vrot.slane %v34, %v38
  %v41 = vadd.f32 %v30, %v39
  %v42 = vadd.f32 %v31, %v39
  %v43 = vadd.f32 %v32, %v39
  %v44 = vadd.f32 %v33, %v39
  %v45 = vmax.f32 %v41, 0.0
  %v46 = vmax.f32 %v42, 0.0
  %v47 = vmax.f32 %v43, 0.0
  %v48 = vmax.f32 %v44, 0.0
  %v49 = vld [vmem:[%s3] sm:$0xff]
  %v50 = vld [vmem:[%s3 + $0x8] sm:$0xff]
  %v51 = vld [vmem:[%s3 + $0x10] sm:$0xff]
  %v52 = vld [vmem:[%s3 + $0x18] sm:$0xff]
  %v53 = vld [vmem:[%s3 + $0x20] sm:$0xff]
  %v54 = vld [vmem:[%s3 + $0x28] sm:$0xff]
  %v55 = vld [vmem:[%s3 + $0x30] sm:$0xff]
  %v56 = vld [vmem:[%s3 + $0x38] sm:$0xff]
  %vm57 = vcmask 523264
  %v59 = vsel %vm57, %v45, 0
  %v62 = vsel %vm57, %v46, 0
  %v65 = vsel %vm57, %v47, 0
  %v68 = vsel %vm57, %v48, 0
  %70 = vmatprep.subr.mxu0 0.0
  %71 = vmatpush1.msra.mxu0 %v49
  %72 = vmatprep.subr.mxu0 0.0
  %73 = vmatpush1.msra.mxu0 %v50
  %74 = vmatprep.subr.mxu0 0.0
  %75 = vmatpush1.msra.mxu0 %v51
  %76 = vmatprep.subr.mxu0 0.0
  %77 = vmatpush1.msra.mxu0 %v52
  %78 = vmatprep.subr.mxu0 0.0
  %79 = vmatpush1.msra.mxu0 %v53
  %80 = vmatprep.subr.mxu0 0.0
  %81 = vmatpush1.msra.mxu0 %v54
  %82 = vmatprep.subr.mxu0 0.0
  %83 = vmatpush1.msra.mxu0 %v55
  %84 = vmatprep.subr.mxu0 0.0
  %85 = vmatpush1.msra.mxu0 %v56
  %86 = vmatprep.subr.mxu0 0.0
  %87 = vmatpush1.msra.mxu0 0.0
  %88 = vmatprep.subr.mxu0 0.0
  %89 = vmatpush1.msra.mxu0 0.0
  %90 = vmatprep.subr.mxu0 0.0
  %91 = vmatpush1.msra.mxu0 0.0
  %92 = vmatprep.subr.mxu0 0.0
  %93 = vmatpush1.msra.mxu0 0.0
  %94 = vmatprep.subr.mxu0 0.0
  %95 = vmatpush1.msra.mxu0 0.0
  %96 = vmatprep.subr.mxu0 0.0
  %97 = vmatpush1.msra.mxu0 0.0
  %98 = vmatprep.subr.mxu0 0.0
  %99 = vmatpush1.msra.mxu0 0.0
  %100 = vmatprep.subr.mxu0 0.0
  %101 = vmatpush1.msra.mxu0 0.0
  %102 = vmatprep.subr.mxu0 0.0
  %103 = vmatpush1.msra.mxu0 0.0
  %104 = vmatprep.subr.mxu0 0.0
  %105 = vmatpush1.msra.mxu0 0.0
  %106 = vmatprep.subr.mxu0 0.0
  %107 = vmatpush1.msra.mxu0 0.0
  %108 = vmatprep.subr.mxu0 0.0
  %109 = vmatpush1.msra.mxu0 0.0
  %110 = vmatprep.subr.mxu0 0.0
  %111 = vmatpush1.msra.mxu0 0.0
  %112 = vmatprep.subr.mxu0 0.0
  %113 = vmatpush1.msra.mxu0 0.0
  %114 = vmatprep.subr.mxu0 0.0
  %115 = vmatpush1.msra.mxu0 0.0
  %116 = vmatprep.subr.mxu0 0.0
  %117 = vmatpush1.msra.mxu0 0.0
  %118 = vmatprep.subr.mxu0 0.0
  %119 = vmatpush1.msra.mxu0 0.0
  %120 = vmatprep.subr.mxu0 0.0
  %121 = vmatpush1.msra.mxu0 0.0
  %122 = vmatprep.subr.mxu0 0.0
  %123 = vmatpush1.msra.mxu0 0.0
  %124 = vmatprep.subr.mxu0 0.0
  %125 = vmatpush1.msra.mxu0 0.0
  %126 = vmatprep.subr.mxu0 0.0
  %127 = vmatpush1.msra.mxu0 0.0
  %128 = vmatprep.subr.mxu0 0.0
  %129 = vmatpush1.msra.mxu0 0.0
  %130 = vmatprep.subr.mxu0 0.0
  %131 = vmatpush1.msra.mxu0 0.0
  %132 = vmatprep.subr.mxu0 0.0
  %133 = vmatpush1.msra.mxu0 0.0
  %134 = vmatprep.mubr.f32.mxu0 0.0
  %135 = vmatmul.mubr.f32.gmra.mrb[0].mxu0 %v59
  %v136 = vpop.f32.mrb[0].mxu0
  %v137 = vadd.f32 0.0, %v136
  %v138 = vpop.f32.mrb[0].mxu0
  %139 = vmatprep.mubr.f32.mxu0 0.0
  %140 = vmatmul.mubr.f32.gmra.mrb[0].mxu0 %v62
  %v141 = vpop.f32.mrb[0].mxu0
  %v142 = vadd.f32 0.0, %v141
  %v143 = vpop.f32.mrb[0].mxu0
  %144 = vmatprep.mubr.f32.mxu0 0.0
  %145 = vmatmul.mubr.f32.gmra.mrb[0].mxu0 %v65
  %v146 = vpop.f32.mrb[0].mxu0
  %v147 = vadd.f32 0.0, %v146
  %v148 = vpop.f32.mrb[0].mxu0
  %149 = vmatprep.mubr.f32.mxu0 0.0
  %150 = vmatmul.mubr.f32.gmra.mrb[0].mxu0 %v68
  %v151 = vpop.f32.mrb[0].mxu0
  %v152 = vadd.f32 0.0, %v151
  %v153 = vpop.f32.mrb[0].mxu0
  %154 = vdwg.mxu0
  %155 = vst [vmem:[%s4] sm:$0xff] %v137
  %156 = vst [vmem:[%s4 + $0x8] sm:$0xff] %v142
  %157 = vst [vmem:[%s4 + $0x10] sm:$0xff] %v147
  %158 = vst [vmem:[%s4 + $0x18] sm:$0xff] %v152
  %v159 = vadd.f32 %v137, %v142
  %v160 = vadd.f32 %v159, %v147
  %v161 = vadd.f32 %v160, %v152
  %v162 = vrot.slane %v161, 4
  %v163 = vadd.f32 %v161, %v162
  %v164 = vrot.slane %v163, 2
  %v165 = vadd.f32 %v163, %v164
  %v166 = vrot.slane %v165, 1
  %v167 = vadd.f32 %v165, %v166
  %v168 = vmul.f32 %v137, %v137
  %v169 = vmul.f32 %v142, %v142
  %v170 = vmul.f32 %v147, %v147
  %v171 = vmul.f32 %v152, %v152
  %v172 = vadd.f32 %v168, %v169
  %v173 = vadd.f32 %v172, %v170
  %v174 = vadd.f32 %v173, %v171
  %v175 = vrot.slane %v174, 4
  %v176 = vadd.f32 %v174, %v175
  %v177 = vrot.slane %v176, 2
  %v178 = vadd.f32 %v176, %v177
  %v179 = vrot.slane %v178, 1
  %v180 = vadd.f32 %v178, %v179
  %vm181 = vcmask 1040384
  %v182 = vsel %vm181, %v167, %v180
  %183 = vst [vmem:[%s5] sm:$0x3] %v182
  // Predicated region
  $region18: #{pointnet_encoder.8} parent=0 // pred_check
    _
  $region19: #{pointnet_encoder.8} parent=0 // pred_check_branch
    %185 = sbr.rel (0) target = $region21
  $region20: #{pointnet_encoder.8} parent=0 // pred_region
    _
  $region21: #{pointnet_encoder.8} parent=0 // pred_fallthru
    _
  // Predicated region
  $region22: #{pointnet_encoder.8} parent=0 // pred_check
    _
  $region23: #{pointnet_encoder.8} parent=0 // pred_check_branch
    %187 = sbr.rel (0) target = $region25
  $region24: #{pointnet_encoder.8} parent=0 // pred_region
    _
  $region25: #{pointnet_encoder.8} parent=0 // pred_fallthru
    _
  // Predicated region
  $region26: #{pointnet_encoder.8} parent=0 // pred_check
    _
  $region27: #{pointnet_encoder.8} parent=0 // pred_check_branch
    %189 = sbr.rel (0) target = $region29
  $region28: #{pointnet_encoder.8} parent=0 // pred_region
    _
  $region29: #{pointnet_encoder.8} parent=0 // pred_fallthru
    _
  // Predicated region
  $region30: #{pointnet_encoder.8} parent=0 // pred_check
    _
  $region31: #{pointnet_encoder.8} parent=0 // pred_check_branch
    %191 = sbr.rel (0) target = $region33
  $region32: #{pointnet_encoder.8} parent=0 // pred_region
    _
  $region33: #{pointnet_encoder.8} parent=0 // pred_fallthru
    _

// kernel: pointnet_encoder.9
$region0: #{pointnet_encoder.9}
  #allocation0 [shape = 'u32[]', space=smem, size = 0x4, offset = 0x4, fixed_abs, tag = 'smem constant byte address 0x4 - core index']
  #allocation1 [shape = 'u32[144,128]{1,0:T(1,128)}', space=vmem, size = 0x12000, scoped, tag = 'internal scratch']
  %s0 = inlined_call_operand.vmem [shape: f32[2,16,128], index: 0, kind: input, shape index: {}]
  %s1 = inlined_call_operand.vmem [shape: f32[1,128], index: 1, kind: input, shape index: {}]
  %s2 = inlined_call_operand.vmem [shape: f32[1,128], index: 2, kind: input, shape index: {}]
  %s3 = inlined_call_operand.hbm [shape: f32[128,1024], index: 3, kind: input, shape index: {}]
  %s4 = inlined_call_operand.vmem [shape: f32[2,4,1024], index: 4, kind: output, shape index: {}]
  %s5 = sld [smem:[#allocation0]]
  $region61: #{pointnet_encoder.9} parent=0
    _
  %s7 = ssub.s32 1, %s5
  %s8 = scalar_select 0, %s7, %s5
  $region1: #{pointnet_encoder.9} parent=0
    #allocation2 [shape = 'u8[524288]{0}', space=vmem, size = 0x80000, scoped, tag = 'input window, operand 3, single buffered']
    #allocation3 [shape = 's32[2]{0}', space=sflag, size = 0x8, scoped, tag = 'scoped memory for pointnet_encoder.9']
    %9 = vsyncpa [#allocation3], 0
    loop: start=0, step=1, limit=4
    $region2: #{pointnet_encoder.9} parent=1 // loop_pre_header
      _
    $region3: #{pointnet_encoder.9} parent=1 // loop_header
      %s11 = sphi 0, %s15
      %p12 = scmp.ge.s32.totalorder %s11, 4
      %s18 = sphi 0, %s30
      %s19 = sphi 0, %s26
      %s20 = sphi 0, %s18
      %s21 = sphi 0, %s19
      %s22 = sphi 0, %s20
      %s23 = sphi 0, %s21
      %s35 = sphi 0, %s37
      %s38 = sphi 0, %s35
      %s39 = sphi 0, %s38
      %s55 = sphi 0, %s39
      %s59 = sphi 0, %s59
      %s61 = sphi 0, %s59
      %s62 = sphi 0, %s61
      %s76 = sphi 0, %s62
      %s80 = sphi 0, %s80
      %s82 = sphi 0, %s80
      %s83 = sphi 0, %s82
      %s97 = sphi 0, %s83
      %s101 = sphi 0, %s101
      %s103 = sphi 0, %s101
      %s104 = sphi 0, %s103
      %s118 = sphi 0, %s104
      %s124 = sphi 0, %s126
      %s127 = sphi 0, %s124
      %s128 = sphi 0, %s127
      %s144 = sphi 0, %s128
    $region4: #{pointnet_encoder.9} parent=1 // loop_header_branch
      %14 = sbr.rel (%p12) target = $region8
    $region5: #{pointnet_encoder.9} parent=1 // loop_body
      %s16 = ssub.s32 %s11, 1
      %s17 = ssub.s32 %s11, 2
      %s24 = sadd.s32 1, %s19
      %p25 = scmp.ge.s32.totalorder %s24, 1
      %s26 = scalar_select %p25, 0, %s24
      %s27 = sadd.s32 1, %s18
      %s28 = scalar_select %p25, %s27, %s18
      %p29 = scmp.ge.s32.totalorder %s28, 2
      %s30 = scalar_select %p29, 0, %s28
      %s31 = ssub.s32 %s18, %s30
      %s32 = ssub.s32 %s19, %s26
      %s33 = sor.u32 %s31, %s32
      %p34 = scmp.eq.s32.totalorder %s33, 0
      %s36 = sadd.s32 %s35, 1
      %s37 = scalar_select %p34, %s35, %s36
      %p40 = pneg %p34
      %p41 = scmp.eq.s32.totalorder %s11, 1
      %p42 = por %p40, %p41
      %p43 = scmp.ne.s32.totalorder %s35, %s38
      %p44 = scmp.eq.s32.totalorder %s11, 0
      %p45 = por %p43, %p44
      %p46 = scmp.ne.s32.totalorder %s35, %s38
      %p47 = scmp.eq.s32.totalorder %s16, 1
      %p48 = por %p46, %p47
      %p49 = scmp.ne.s32.totalorder %s38, %s39
      %p50 = scmp.eq.s32.totalorder %s16, 0
      %p51 = por %p49, %p50
      %p52 = scmp.ne.s32.totalorder %s38, %s39
      %p53 = scmp.eq.s32.totalorder %s17, 1
      %p54 = por %p52, %p53
      %p56 = scmp.ne.s32.totalorder %s39, %s55
      %p57 = scmp.eq.s32.totalorder %s17, 0
      %p58 = por %p56, %p57
      %s60 = sadd.s32 %s59, 1
      %p63 = scmp.eq.s32.totalorder %s11, 1
      %p64 = scmp.ne.s32.totalorder %s59, %s61
      %p65 = scmp.eq.s32.totalorder %s11, 0
      %p66 = por %p64, %p65
      %p67 = scmp.ne.s32.totalorder %s59, %s61
      %p68 = scmp.eq.s32.totalorder %s16, 1
      %p69 = por %p67, %p68
      %p70 = scmp.ne.s32.totalorder %s61, %s62
      %p71 = scmp.eq.s32.totalorder %s16, 0
      %p72 = por %p70, %p71
      %p73 = scmp.ne.s32.totalorder %s61, %s62
      %p74 = scmp.eq.s32.totalorder %s17, 1
      %p75 = por %p73, %p74
      %p77 = scmp.ne.s32.totalorder %s62, %s76
      %p78 = scmp.eq.s32.totalorder %s17, 0
      %p79 = por %p77, %p78
      %s81 = sadd.s32 %s80, 1
      %p84 = scmp.eq.s32.totalorder %s11, 1
      %p85 = scmp.ne.s32.totalorder %s80, %s82
      %p86 = scmp.eq.s32.totalorder %s11, 0
      %p87 = por %p85, %p86
      %p88 = scmp.ne.s32.totalorder %s80, %s82
      %p89 = scmp.eq.s32.totalorder %s16, 1
      %p90 = por %p88, %p89
      %p91 = scmp.ne.s32.totalorder %s82, %s83
      %p92 = scmp.eq.s32.totalorder %s16, 0
      %p93 = por %p91, %p92
      %p94 = scmp.ne.s32.totalorder %s82, %s83
      %p95 = scmp.eq.s32.totalorder %s17, 1
      %p96 = por %p94, %p95
      %p98 = scmp.ne.s32.totalorder %s83, %s97
      %p99 = scmp.eq.s32.totalorder %s17, 0
      %p100 = por %p98, %p99
      %s102 = sadd.s32 %s101, 1
      %p105 = scmp.eq.s32.totalorder %s11, 1
      %p106 = scmp.ne.s32.totalorder %s101, %s103
      %p107 = scmp.eq.s32.totalorder %s11, 0
      %p108 = por %p106, %p107
      %p109 = scmp.ne.s32.totalorder %s101, %s103
      %p110 = scmp.eq.s32.totalorder %s16, 1
      %p111 = por %p109, %p110
      %p112 = scmp.ne.s32.totalorder %s103, %s104
      %p113 = scmp.eq.s32.totalorder %s16, 0
      %p114 = por %p112, %p113
      %p115 = scmp.ne.s32.totalorder %s103, %s104
      %p116 = scmp.eq.s32.totalorder %s17, 1
      %p117 = por %p115, %p116
      %p119 = scmp.ne.s32.totalorder %s104, %s118
      %p120 = scmp.eq.s32.totalorder %s17, 0
      %p121 = por %p119, %p120
      %s122 = ssub.s32 %s18, %s30
      %p123 = scmp.eq.s32.totalorder %s122, 0
      %s125 = sadd.s32 %s124, 1
      %s126 = scalar_select %p123, %s124, %s125
      %p129 = pneg %p123
      %p130 = scmp.eq.s32.totalorder %s11, 1
      %p131 = por %p129, %p130
      %p132 = scmp.ne.s32.totalorder %s124, %s127
      %p133 = scmp.eq.s32.totalorder %s11, 0
      %p134 = por %p132, %p133
      %p135 = scmp.ne.s32.totalorder %s124, %s127
      %p136 = scmp.eq.s32.totalorder %s16, 1
      %p137 = por %p135, %p136
      %p138 = scmp.ne.s32.totalorder %s127, %s128
      %p139 = scmp.eq.s32.totalorder %s16, 0
      %p140 = por %p138, %p139
      %p141 = scmp.ne.s32.totalorder %s127, %s128
      %p142 = scmp.eq.s32.totalorder %s17, 1
      %p143 = por %p141, %p142
      %p145 = scmp.ne.s32.totalorder %s128, %s144
      %p146 = scmp.eq.s32.totalorder %s17, 0
      %p147 = por %p145, %p146
      %p148 = scmp.le.s32.totalorder 1, %s11
      %p149 = scmp.lt.s32.totalorder %s11, 3
      %p150 = pnand %p148, %p149
      %p151 = pneg %p150
      // Predicated region
      $region9: #{pointnet_encoder.9} parent=5 // pred_check
        _
      $region10: #{pointnet_encoder.9} parent=5 // pred_check_branch
        %153 = sbr.rel (%p150) target = $region12
      $region11: #{pointnet_encoder.9} parent=5 // pred_region
        %s154 = ssub.s32 %s11, 1
        // Predicated region
        $region13: #{pointnet_encoder.9} parent=11 // pred_check
          %p155 = pneg %p72
        $region14: #{pointnet_encoder.9} parent=11 // pred_check_branch
          %157 = sbr.rel (%p155) target = $region16
        $region15: #{pointnet_encoder.9} parent=11 // pred_region
          _
        $region16: #{pointnet_encoder.9} parent=11 // pred_fallthru
          _
        // Predicated region
        $region17: #{pointnet_encoder.9} parent=11 // pred_check
          %p158 = pneg %p93
        $region18: #{pointnet_encoder.9} parent=11 // pred_check_branch
          %160 = sbr.rel (%p158) target = $region20
        $region19: #{pointnet_encoder.9} parent=11 // pred_region
          _
        $region20: #{pointnet_encoder.9} parent=11 // pred_fallthru
          _
        // Predicated region
        $region21: #{pointnet_encoder.9} parent=11 // pred_check
          %p161 = pneg %p114
        $region22: #{pointnet_encoder.9} parent=11 // pred_check_branch
          %163 = sbr.rel (%p161) target = $region24
        $region23: #{pointnet_encoder.9} parent=11 // pred_region
          %s165 = ssub.s32 16384, 16384
          %166 = vsyncadd [#allocation3], %s165
          %s167 = sshll.u32 [#allocation2], 4
          %s168 = int_to_ptr.vmem [resolvable:$true] %s167
          %173 = dma.hbm_to_vmem [thread:$0]  %s3, 16384, %s168, [#allocation3], 1024, 1024, 64
        $region24: #{pointnet_encoder.9} parent=11 // pred_fallthru
          _
      $region12: #{pointnet_encoder.9} parent=5 // pred_fallthru
        _
      %p174 = scmp.lt.s32.totalorder %s11, 2
      // Predicated region
      $region25: #{pointnet_encoder.9} parent=5 // pred_check
        %p175 = pneg %p174
      $region26: #{pointnet_encoder.9} parent=5 // pred_check_branch
        %177 = sbr.rel (%p175) target = $region28
      $region27: #{pointnet_encoder.9} parent=5 // pred_region
        // Predicated region
        $region29: #{pointnet_encoder.9} parent=27 // pred_check
          %p178 = pneg %p45
        $region30: #{pointnet_encoder.9} parent=27 // pred_check_branch
          %180 = sbr.rel (%p178) target = $region32
        $region31: #{pointnet_encoder.9} parent=27 // pred_region
          %s181 = smul.u32 2, %s19
          %p182 = scmp.lt.s32.totalorder %s18, 1
          %s183 = scalar_select %p182, %s18, 1
          %p184 = scmp.lt.s32.totalorder %s181, 1
          %s185 = scalar_select %p184, %s181, 1
          %s186 = smul.addr %s183, 2
          %s187 = sadd.s32 %s185, %s186
          %s188 = smul.addr %s187, 8
          %s189 = scalar_lea.vmem %s0, %s188
          %s190 = smul.u32 2, %s19
        $region32: #{pointnet_encoder.9} parent=27 // pred_fallthru
          _
      $region28: #{pointnet_encoder.9} parent=5 // pred_fallthru
        _
      %p191 = scmp.le.s32.totalorder 1, %s11
      %p192 = scmp.lt.s32.totalorder %s11, 3
      %p193 = pnand %p191, %p192
      %p194 = pneg %p193
      // Predicated region
      $region33: #{pointnet_encoder.9} parent=5 // pred_check
        _
      $region34: #{pointnet_encoder.9} parent=5 // pred_check_branch
        %196 = sbr.rel (%p193) target = $region36
      $region35: #{pointnet_encoder.9} parent=5 // pred_region
        %s197 = ssub.s32 %s11, 1
        // Predicated region
        $region37: #{pointnet_encoder.9} parent=35 // pred_check
          %p198 = pneg %p114
        $region38: #{pointnet_encoder.9} parent=35 // pred_check_branch
          %200 = sbr.rel (%p198) target = $region40
        $region39: #{pointnet_encoder.9} parent=35 // pred_region
          %201 = dma.done [#allocation3], 16384
        $region40: #{pointnet_encoder.9} parent=35 // pred_fallthru
          _
        %s202 = smul.u32 2, %s21
        %p203 = scmp.lt.s32.totalorder %s20, 1
        %s204 = scalar_select %p203, %s20, 1
        %p205 = scmp.lt.s32.totalorder %s202, 1
        %s206 = scalar_select %p205, %s202, 1
        %s207 = smul.addr %s204, 2
        %s208 = sadd.s32 %s206, %s207
        %s209 = smul.addr %s208, 8
        %s210 = scalar_lea.vmem %s0, %s209
        %p211 = pneg %p51
        %p212 = pneg %p48
        %p213 = pneg %p72
        %p214 = pneg %p69
        %p215 = pneg %p93
        %p216 = pneg %p90
        %p217 = pneg %p114
        %p218 = pneg %p111
        %p219 = pneg %p140
        %p220 = pneg %p137
        %p221 = scmp.lt.s32.totalorder %s20, 1
        %s222 = scalar_select %p221, %s20, 1
        %s223 = smul.addr %s222, 8
        %s224 = smul.addr %s223, 4
        %s225 = scalar_lea.vmem %s4, %s224
        %s226 = smul.u32 2, %s21
        %p227 = scmp.lt.s32.totalorder %s20, 1
        %s228 = scalar_select %p227, %s20, 1
        %p229 = scmp.lt.s32.totalorder %s226, 1
        %s230 = scalar_select %p229, %s226, 1
        %s231 = smul.addr %s228, 2
        %s232 = sadd.s32 %s230, %s231
        %s233 = smul.addr %s232, 8
        %s234 = scalar_lea.vmem %s0, %s233
        %s235 = smul.u32 2, %s21
        %p236 = scmp.lt.s32.totalorder %s20, 1
        %s237 = scalar_select %p236, %s20, 1
        %s238 = smul.addr %s237, 8
        %s239 = smul.addr %s238, 4
        %s240 = scalar_lea.vmem %s4, %s239
        %v241 = vld [vmem:[%s234] sm:$0xff]
        %v242 = vld [vmem:[%s234 + $0x8] sm:$0xff]
        %v243 = vld [vmem:[%s1] sm:$0x1]
        %v245 = vlaneseq
        %v246 = vshrl.u32 %v245, 7
        %v247 = vsub.s32 0, %v246
        %v248 = vrot.slane %v243, %v247
        %v250 = vmul.f32 %v241, %v248
        %v251 = vmul.f32 %v242, %v248
        %v252 = vld [vmem:[%s2] sm:$0x1]
        %v254 = vlaneseq
        %v255 = vshrl.u32 %v254, 7
        %v256 = vsub.s32 0, %v255
        %v257 = vrot.slane %v252, %v256
        %v259 = vadd.f32 %v250, %v257
        %v260 = vadd.f32 %v251, %v257
        %v261 = vmax.f32 %v259, 0.0
        %v262 = vmax.f32 %v260, 0.0
        %v263 = vld [vmem:[#allocation2] sm:$0xff]
        %v264 = vld [vmem:[#allocation2 + $0x8] sm:$0xff]
        %v265 = vld [vmem:[#allocation2 + $0x10] sm:$0xff]
        %v266 = vld [vmem:[#allocation2 + $0x18] sm:$0xff]
        %v267 = vld [vmem:[#allocation2 + $0x20] sm:$0xff]
        %v268 = vld [vmem:[#allocation2 + $0x28] sm:$0xff]
        %v269 = vld [vmem:[#allocation2 + $0x30] sm:$0xff]
        %v270 = vld [vmem:[#allocation2 + $0x38] sm:$0xff]
        %v271 = vld [vmem:[#allocation2 + $0x40] sm:$0xff]
        %v272 = vld [vmem:[#allocation2 + $0x48] sm:$0xff]
        %v273 = vld [vmem:[#allocation2 + $0x50] sm:$0xff]
        %v274 = vld [vmem:[#allocation2 + $0x58] sm:$0xff]
        %v275 = vld [vmem:[#allocation2 + $0x60] sm:$0xff]
        %v276 = vld [vmem:[#allocation2 + $0x68] sm:$0xff]
        %v277 = vld [vmem:[#allocation2 + $0x70] sm:$0xff]
        %v278 = vld [vmem:[#allocation2 + $0x78] sm:$0xff]
        %v279 = vld [vmem:[#allocation2 + $0x80] sm:$0xff]
        %v280 = vld [vmem:[#allocation2 + $0x88] sm:$0xff]
        %v281 = vld [vmem:[#allocation2 + $0x90] sm:$0xff]
        %v282 = vld [vmem:[#allocation2 + $0x98] sm:$0xff]
        %v283 = vld [vmem:[#allocation2 + $0xa0] sm:$0xff]
        %v284 = vld [vmem:[#allocation2 + $0xa8] sm:$0xff]
        %v285 = vld [vmem:[#allocation2 + $0xb0] sm:$0xff]
        %v286 = vld [vmem:[#allocation2 + $0xb8] sm:$0xff]
        %v287 = vld [vmem:[#allocation2 + $0xc0] sm:$0xff]
        %v288 = vld [vmem:[#allocation2 + $0xc8] sm:$0xff]
        %v289 = vld [vmem:[#allocation2 + $0xd0] sm:$0xff]
        %v290 = vld [vmem:[#allocation2 + $0xd8] sm:$0xff]
        %v291 = vld [vmem:[#allocation2 + $0xe0] sm:$0xff]
        %v292 = vld [vmem:[#allocation2 + $0xe8] sm:$0xff]
        %v293 = vld [vmem:[#allocation2 + $0xf0] sm:$0xff]
        %v294 = vld [vmem:[#allocation2 + $0xf8] sm:$0xff]
        %v295 = vld [vmem:[#allocation2 + $0x100] sm:$0xff]
        %v296 = vld [vmem:[#allocation2 + $0x108] sm:$0xff]
        %v297 = vld [vmem:[#allocation2 + $0x110] sm:$0xff]
        %v298 = vld [vmem:[#allocation2 + $0x118] sm:$0xff]
        %v299 = vld [vmem:[#allocation2 + $0x120] sm:$0xff]
        %v300 = vld [vmem:[#allocation2 + $0x128] sm:$0xff]
        %v301 = vld [vmem:[#allocation2 + $0x130] sm:$0xff]
        %v302 = vld [vmem:[#allocation2 + $0x138] sm:$0xff]
        %v303 = vld [vmem:[#allocation2 + $0x140] sm:$0xff]
        %v304 = vld [vmem:[#allocation2 + $0x148] sm:$0xff]
        %v305 = vld [vmem:[#allocation2 + $0x150] sm:$0xff]
        %v306 = vld [vmem:[#allocation2 + $0x158] sm:$0xff]
        %v307 = vld [vmem:[#allocation2 + $0x160] sm:$0xff]
        %v308 = vld [vmem:[#allocation2 + $0x168] sm:$0xff]
        %v309 = vld [vmem:[#allocation2 + $0x170] sm:$0xff]
        %v310 = vld [vmem:[#allocation2 + $0x178] sm:$0xff]
        %v311 = vld [vmem:[#allocation2 + $0x180] sm:$0xff]
        %v312 = vld [vmem:[#allocation2 + $0x188] sm:$0xff]
        %v313 = vld [vmem:[#allocation2 + $0x190] sm:$0xff]
        %v314 = vld [vmem:[#allocation2 + $0x198] sm:$0xff]
        %v315 = vld [vmem:[#allocation2 + $0x1a0] sm:$0xff]
        %v316 = vld [vmem:[#allocation2 + $0x1a8] sm:$0xff]
        %v317 = vld [vmem:[#allocation2 + $0x1b0] sm:$0xff]
        %v318 = vld [vmem:[#allocation2 + $0x1b8] sm:$0xff]
        %v319 = vld [vmem:[#allocation2 + $0x1c0] sm:$0xff]
        %v320 = vld [vmem:[#allocation2 + $0x1c8] sm:$0xff]
        %v321 = vld [vmem:[#allocation2 + $0x1d0] sm:$0xff]
        %v322 = vld [vmem:[#allocation2 + $0x1d8] sm:$0xff]
        %v323 = vld [vmem:[#allocation2 + $0x1e0] sm:$0xff]
        %v324 = vld [vmem:[#allocation2 + $0x1e8] sm:$0xff]
        %v325 = vld [vmem:[#allocation2 + $0x1f0] sm:$0xff]
        %v326 = vld [vmem:[#allocation2 + $0x1f8] sm:$0xff]
        %v327 = vld [vmem:[#allocation2 + $0x200] sm:$0xff]
        %v328 = vld [vmem:[#allocation2 + $0x208] sm:$0xff]
        %v329 = vld [vmem:[#allocation2 + $0x210] sm:$0xff]
        %v330 = vld [vmem:[#allocation2 + $0x218] sm:$0xff]
        %v331 = vld [vmem:[#allocation2 + $0x220] sm:$0xff]
        %v332 = vld [vmem:[#allocation2 + $0x228] sm:$0xff]
        %v333 = vld [vmem:[#allocation2 + $0x230] sm:$0xff]
        %v334 = vld [vmem:[#allocation2 + $0x238] sm:$0xff]
        %v335 = vld [vmem:[#allocation2 + $0x240] sm:$0xff]
        %v336 = vld [vmem:[#allocation2 + $0x248] sm:$0xff]
        %v337 = vld [vmem:[#allocation2 + $0x250] sm:$0xff]
        %v338 = vld [vmem:[#allocation2 + $0x258] sm:$0xff]
        %v339 = vld [vmem:[#allocation2 + $0x260] sm:$0xff]
        %v340 = vld [vmem:[#allocation2 + $0x268] sm:$0xff]
        %v341 = vld [vmem:[#allocation2 + $0x270] sm:$0xff]
        %v342 = vld [vmem:[#allocation2 + $0x278] sm:$0xff]
        %v343 = vld [vmem:[#allocation2 + $0x280] sm:$0xff]
        %v344 = vld [vmem:[#allocation2 + $0x288] sm:$0xff]
        %v345 = vld [vmem:[#allocation2 + $0x290] sm:$0xff]
        %v346 = vld [vmem:[#allocation2 + $0x298] sm:$0xff]
        %v347 = vld [vmem:[#allocation2 + $0x2a0] sm:$0xff]
        %v348 = vld [vmem:[#allocation2 + $0x2a8] sm:$0xff]
        %v349 = vld [vmem:[#allocation2 + $0x2b0] sm:$0xff]
        %v350 = vld [vmem:[#allocation2 + $0x2b8] sm:$0xff]
        %v351 = vld [vmem:[#allocation2 + $0x2c0] sm:$0xff]
        %v352 = vld [vmem:[#allocation2 + $0x2c8] sm:$0xff]
        %v353 = vld [vmem:[#allocation2 + $0x2d0] sm:$0xff]
        %v354 = vld [vmem:[#allocation2 + $0x2d8] sm:$0xff]
        %v355 = vld [vmem:[#allocation2 + $0x2e0] sm:$0xff]
        %v356 = vld [vmem:[#allocation2 + $0x2e8] sm:$0xff]
        %v357 = vld [vmem:[#allocation2 + $0x2f0] sm:$0xff]
        %v358 = vld [vmem:[#allocation2 + $0x2f8] sm:$0xff]
        %v359 = vld [vmem:[#allocation2 + $0x300] sm:$0xff]
        %v360 = vld [vmem:[#allocation2 + $0x308] sm:$0xff]
        %v361 = vld [vmem:[#allocation2 + $0x310] sm:$0xff]
        %v362 = vld [vmem:[#allocation2 + $0x318] sm:$0xff]
        %v363 = vld [vmem:[#allocation2 + $0x320] sm:$0xff]
        %v364 = vld [vmem:[#allocation2 + $0x328] sm:$0xff]
        %v365 = vld [vmem:[#allocation2 + $0x330] sm:$0xff]
        %v366 = vld [vmem:[#allocation2 + $0x338] sm:$0xff]
        %v367 = vld [vmem:[#allocation2 + $0x340] sm:$0xff]
        %v368 = vld [vmem:[#allocation2 + $0x348] sm:$0xff]
        %v369 = vld [vmem:[#allocation2 + $0x350] sm:$0xff]
        %v370 = vld [vmem:[#allocation2 + $0x358] sm:$0xff]
        %v371 = vld [vmem:[#allocation2 + $0x360] sm:$0xff]
        %v372 = vld [vmem:[#allocation2 + $0x368] sm:$0xff]
        %v373 = vld [vmem:[#allocation2 + $0x370] sm:$0xff]
        %v374 = vld [vmem:[#allocation2 + $0x378] sm:$0xff]
        %v375 = vld [vmem:[#allocation2 + $0x380] sm:$0xff]
        %v376 = vld [vmem:[#allocation2 + $0x388] sm:$0xff]
        %v377 = vld [vmem:[#allocation2 + $0x390] sm:$0xff]
        %v378 = vld [vmem:[#allocation2 + $0x398] sm:$0xff]
        %v379 = vld [vmem:[#allocation2 + $0x3a0] sm:$0xff]
        %v380 = vld [vmem:[#allocation2 + $0x3a8] sm:$0xff]
        %v381 = vld [vmem:[#allocation2 + $0x3b0] sm:$0xff]
        %v382 = vld [vmem:[#allocation2 + $0x3b8] sm:$0xff]
        %v383 = vld [vmem:[#allocation2 + $0x3c0] sm:$0xff]
        %v384 = vld [vmem:[#allocation2 + $0x3c8] sm:$0xff]
        %v385 = vld [vmem:[#allocation2 + $0x3d0] sm:$0xff]
        %v386 = vld [vmem:[#allocation2 + $0x3d8] sm:$0xff]
        %v387 = vld [vmem:[#allocation2 + $0x3e0] sm:$0xff]
        %v388 = vld [vmem:[#allocation2 + $0x3e8] sm:$0xff]
        %v389 = vld [vmem:[#allocation2 + $0x3f0] sm:$0xff]
        %v390 = vld [vmem:[#allocation2 + $0x3f8] sm:$0xff]
        %391 = vmatprep.subr.mxu0 %v264
        %392 = vmatpush1.msra.mxu0 %v263
        %393 = vmatprep.subr.mxu0 %v272
        %394 = vmatpush1.msra.mxu0 %v271
        %395 = vmatprep.subr.mxu0 %v280
        %396 = vmatpush1.msra.mxu0 %v279
        %397 = vmatprep.subr.mxu0 %v288
        %398 = vmatpush1.msra.mxu0 %v287
        %399 = vmatprep.subr.mxu0 %v296
        %400 = vmatpush1.msra.mxu0 %v295
        %401 = vmatprep.subr.mxu0 %v304
        %402 = vmatpush1.msra.mxu0 %v303
        %403 = vmatprep.subr.mxu0 %v312
        %404 = vmatpush1.msra.mxu0 %v311
        %405 = vmatprep.subr.mxu0 %v320
        %406 = vmatpush1.msra.mxu0 %v319
        %407 = vmatprep.subr.mxu0 %v328
        %408 = vmatpush1.msra.mxu0 %v327
        %409 = vmatprep.subr.mxu0 %v336
        %410 = vmatpush1.msra.mxu0 %v335
        %411 = vmatprep.subr.mxu0 %v344
        %412 = vmatpush1.msra.mxu0 %v343
        %413 = vmatprep.subr.mxu0 %v352
        %414 = vmatpush1.msra.mxu0 %v351
        %415 = vmatprep.subr.mxu0 %v360
        %416 = vmatpush1.msra.mxu0 %v359
        %417 = vmatprep.subr.mxu0 %v368
        %418 = vmatpush1.msra.mxu0 %v367
        %419 = vmatprep.subr.mxu0 %v376
        %420 = vmatpush1.msra.mxu0 %v375
        %421 = vmatprep.subr.mxu0 %v384
        %422 = vmatpush1.msra.mxu0 %v383
        %423 = vmatprep.subr.mxu0 0.0
        %424 = vmatpush1.msra.mxu0 0.0
        %425 = vmatprep.subr.mxu0 0.0
        %426 = vmatpush1.msra.mxu0 0.0
        %427 = vmatprep.subr.mxu0 0.0
        %428 = vmatpush1.msra.mxu0 0.0
        %429 = vmatprep.subr.mxu0 0.0
        %430 = vmatpush1.msra.mxu0 0.0
        %431 = vmatprep.subr.mxu0 0.0
        %432 = vmatpush1.msra.mxu0 0.0
        %433 = vmatprep.subr.mxu0 0.0
        %434 = vmatpush1.msra.mxu0 0.0
        %435 = vmatprep.subr.mxu0 0.0
        %436 = vmatpush1.msra.mxu0 0.0
        %437 = vmatprep.subr.mxu0 0.0
        %438 = vmatpush1.msra.mxu0 0.0
        %439 = vmatprep.subr.mxu0 0.0
        %440 = vmatpush1.msra.mxu0 0.0
        %441 = vmatprep.subr.mxu0 0.0
        %442 = vmatpush1.msra.mxu0 0.0
        %443 = vmatprep.subr.mxu0 0.0
        %444 = vmatpush1.msra.mxu0 0.0
        %445 = vmatprep.subr.mxu0 0.0
        %446 = vmatpush1.msra.mxu0 0.0
        %447 = vmatprep.subr.mxu0 0.0
        %448 = vmatpush1.msra.mxu0 0.0
        %449 = vmatprep.subr.mxu0 0.0
        %450 = vmatpush1.msra.mxu0 0.0
        %451 = vmatprep.subr.mxu0 0.0
        %452 = vmatpush1.msra.mxu0 0.0
        %453 = vmatprep.subr.mxu0 0.0
        %454 = vmatpush1.msra.mxu0 0.0
        %455 = vmatprep.mubr.f32.mxu0 0.0
        %456 = vmatmul.mubr.f32.gmra.mrb[0].mxu0 %v261
        %v457 = vpop.f32.mrb[0].mxu0
        %v458 = vadd.f32 0.0, %v457
        %v459 = vpop.f32.mrb[0].mxu0
        %v460 = vadd.f32 0.0, %v459
        %461 = vmatprep.mubr.f32.mxu0 0.0
        %462 = vmatmul.mubr.f32.gmra.mrb[0].mxu0 %v262
        %v463 = vpop.f32.mrb[0].mxu0
        %v464 = vadd.f32 0.0, %v463
        %v465 = vpop.f32.mrb[0].mxu0
        %v466 = vadd.f32 0.0, %v465
        %467 = vdwg.mxu0
        %468 = vmatprep.subr.mxu0 %v266
        %469 = vmatpush1.msra.mxu0 %v265
        %470 = vmatprep.subr.mxu0 %v274
        %471 = vmatpush1.msra.mxu0 %v273
        %472 = vmatprep.subr.mxu0 %v282
        %473 = vmatpush1.msra.mxu0 %v281
        %474 = vmatprep.subr.mxu0 %v290
        %475 = vmatpush1.msra.mxu0 %v289
        %476 = vmatprep.subr.mxu0 %v298
        %477 = vmatpush1.msra.mxu0 %v297
        %478 = vmatprep.subr.mxu0 %v306
        %479 = vmatpush1.msra.mxu0 %v305
        %480 = vmatprep.subr.mxu0 %v314
        %481 = vmatpush1.msra.mxu0 %v313
        %482 = vmatprep.subr.mxu0 %v322
        %483 = vmatpush1.msra.mxu0 %v321
        %484 = vmatprep.subr.mxu0 %v330
        %485 = vmatpush1.msra.mxu0 %v329
        %486 = vmatprep.subr.mxu0 %v338
        %487 = vmatpush1.msra.mxu0 %v337
        %488 = vmatprep.subr.mxu0 %v346
        %489 = vmatpush1.msra.mxu0 %v345
        %490 = vmatprep.subr.mxu0 %v354
        %491 = vmatpush1.msra.mxu0 %v353
        %492 = vmatprep.subr.mxu0 %v362
        %493 = vmatpush1.msra.mxu0 %v361
        %494 = vmatprep.subr.mxu0 %v370
        %495 = vmatpush1.msra.mxu0 %v369
        %496 = vmatprep.subr.mxu0 %v378
        %497 = vmatpush1.msra.mxu0 %v377
        %498 = vmatprep.subr.mxu0 %v386
        %499 = vmatpush1.msra.mxu0 %v385
        %500 = vmatprep.subr.mxu0 0.0
        %501 = vmatpush1.msra.mxu0 0.0
        %502 = vmatprep.subr.mxu0 0.0
        %503 = vmatpush1.msra.mxu0 0.0
        %504 = vmatprep.subr.mxu0 0.0
        %505 = vmatpush1.msra.mxu0 0.0
        %506 = vmatprep.subr.mxu0 0.0
        %507 = vmatpush1.msra.mxu0 0.0
        %508 = vmatprep.subr.mxu0 0.0
        %509 = vmatpush1.msra.mxu0 0.0
        %510 = vmatprep.subr.mxu0 0.0
        %511 = vmatpush1.msra.mxu0 0.0
        %512 = vmatprep.subr.mxu0 0.0
        %513 = vmatpush1.msra.mxu0 0.0
        %514 = vmatprep.subr.mxu0 0.0
        %515 = vmatpush1.msra.mxu0 0.0
        %516 = vmatprep.subr.mxu0 0.0
        %517 = vmatpush1.msra.mxu0 0.0
        %518 = vmatprep.subr.mxu0 0.0
        %519 = vmatpush1.msra.mxu0 0.0
        %520 = vmatprep.subr.mxu0 0.0
        %521 = vmatpush1.msra.mxu0 0.0
        %522 = vmatprep.subr.mxu0 0.0
        %523 = vmatpush1.msra.mxu0 0.0
        %524 = vmatprep.subr.mxu0 0.0
        %525 = vmatpush1.msra.mxu0 0.0
        %526 = vmatprep.subr.mxu0 0.0
        %527 = vmatpush1.msra.mxu0 0.0
        %528 = vmatprep.subr.mxu0 0.0
        %529 = vmatpush1.msra.mxu0 0.0
        %530 = vmatprep.subr.mxu0 0.0
        %531 = vmatpush1.msra.mxu0 0.0
        %532 = vmatprep.mubr.f32.mxu0 0.0
        %533 = vmatmul.mubr.f32.gmra.mrb[0].mxu0 %v261
        %v534 = vpop.f32.mrb[0].mxu0
        %v535 = vadd.f32 0.0, %v534
        %v536 = vpop.f32.mrb[0].mxu0
        %v537 = vadd.f32 0.0, %v536
        %538 = vmatprep.mubr.f32.mxu0 0.0
        %539 = vmatmul.mubr.f32.gmra.mrb[0].mxu0 %v262
        %v540 = vpop.f32.mrb[0].mxu0
        %v541 = vadd.f32 0.0, %v540
        %v542 = vpop.f32.mrb[0].mxu0
        %v543 = vadd.f32 0.0, %v542
        %544 = vdwg.mxu0
        %545 = vmatprep.subr.mxu0 %v268
        %546 = vmatpush1.msra.mxu0 %v267
        %547 = vmatprep.subr.mxu0 %v276
        %548 = vmatpush1.msra.mxu0 %v275
        %549 = vmatprep.subr.mxu0 %v284
        %550 = vmatpush1.msra.mxu0 %v283
        %551 = vmatprep.subr.mxu0 %v292
        %552 = vmatpush1.msra.mxu0 %v291
        %553 = vmatprep.subr.mxu0 %v300
        %554 = vmatpush1.msra.mxu0 %v299
        %555 = vmatprep.subr.mxu0 %v308
        %556 = vmatpush1.msra.mxu0 %v307
        %557 = vmatprep.subr.mxu0 %v316
        %558 = vmatpush1.msra.mxu0 %v315
        %559 = vmatprep.subr.mxu0 %v324
        %560 = vmatpush1.msra.mxu0 %v323
        %561 = vmatprep.subr.mxu0 %v332
        %562 = vmatpush1.msra.mxu0 %v331
        %563 = vmatprep.subr.mxu0 %v340
        %564 = vmatpush1.msra.mxu0 %v339
        %565 = vmatprep.subr.mxu0 %v348
        %566 = vmatpush1.msra.mxu0 %v347
        %567 = vmatprep.subr.mxu0 %v356
        %568 = vmatpush1.msra.mxu0 %v355
        %569 = vmatprep.subr.mxu0 %v364
        %570 = vmatpush1.msra.mxu0 %v363
        %571 = vmatprep.subr.mxu0 %v372
        %572 = vmatpush1.msra.mxu0 %v371
        %573 = vmatprep.subr.mxu0 %v380
        %574 = vmatpush1.msra.mxu0 %v379
        %575 = vmatprep.subr.mxu0 %v388
        %576 = vmatpush1.msra.mxu0 %v387
        %577 = vmatprep.subr.mxu0 0.0
        %578 = vmatpush1.msra.mxu0 0.0
        %579 = vmatprep.subr.mxu0 0.0
        %580 = vmatpush1.msra.mxu0 0.0
        %581 = vmatprep.subr.mxu0 0.0
        %582 = vmatpush1.msra.mxu0 0.0
        %583 = vmatprep.subr.mxu0 0.0
        %584 = vmatpush1.msra.mxu0 0.0
        %585 = vmatprep.subr.mxu0 0.0
        %586 = vmatpush1.msra.mxu0 0.0
        %587 = vmatprep.subr.mxu0 0.0
        %588 = vmatpush1.msra.mxu0 0.0
        %589 = vmatprep.subr.mxu0 0.0
        %590 = vmatpush1.msra.mxu0 0.0
        %591 = vmatprep.subr.mxu0 0.0
        %592 = vmatpush1.msra.mxu0 0.0
        %593 = vmatprep.subr.mxu0 0.0
        %594 = vmatpush1.msra.mxu0 0.0
        %595 = vmatprep.subr.mxu0 0.0
        %596 = vmatpush1.msra.mxu0 0.0
        %597 = vmatprep.subr.mxu0 0.0
        %598 = vmatpush1.msra.mxu0 0.0
        %599 = vmatprep.subr.mxu0 0.0
        %600 = vmatpush1.msra.mxu0 0.0
        %601 = vmatprep.subr.mxu0 0.0
        %602 = vmatpush1.msra.mxu0 0.0
        %603 = vmatprep.subr.mxu0 0.0
        %604 = vmatpush1.msra.mxu0 0.0
        %605 = vmatprep.subr.mxu0 0.0
        %606 = vmatpush1.msra.mxu0 0.0
        %607 = vmatprep.subr.mxu0 0.0
        %608 = vmatpush1.msra.mxu0 0.0
        %609 = vmatprep.mubr.f32.mxu0 0.0
        %610 = vmatmul.mubr.f32.gmra.mrb[0].mxu0 %v261
        %v611 = vpop.f32.mrb[0].mxu0
        %v612 = vadd.f32 0.0, %v611
        %v613 = vpop.f32.mrb[0].mxu0
        %v614 = vadd.f32 0.0, %v613
        %615 = vmatprep.mubr.f32.mxu0 0.0
        %616 = vmatmul.mubr.f32.gmra.mrb[0].mxu0 %v262
        %v617 = vpop.f32.mrb[0].mxu0
        %v618 = vadd.f32 0.0, %v617
        %v619 = vpop.f32.mrb[0].mxu0
        %v620 = vadd.f32 0.0, %v619
        %621 = vdwg.mxu0
        %622 = vmatprep.subr.mxu0 %v270
        %623 = vmatpush1.msra.mxu0 %v269
        %624 = vmatprep.subr.mxu0 %v278
        %625 = vmatpush1.msra.mxu0 %v277
        %626 = vmatprep.subr.mxu0 %v286
        %627 = vmatpush1.msra.mxu0 %v285
        %628 = vmatprep.subr.mxu0 %v294
        %629 = vmatpush1.msra.mxu0 %v293
        %630 = vmatprep.subr.mxu0 %v302
        %631 = vmatpush1.msra.mxu0 %v301
        %632 = vmatprep.subr.mxu0 %v310
        %633 = vmatpush1.msra.mxu0 %v309
        %634 = vmatprep.subr.mxu0 %v318
        %635 = vmatpush1.msra.mxu0 %v317
        %636 = vmatprep.subr.mxu0 %v326
        %637 = vmatpush1.msra.mxu0 %v325
        %638 = vmatprep.subr.mxu0 %v334
        %639 = vmatpush1.msra.mxu0 %v333
        %640 = vmatprep.subr.mxu0 %v342
        %641 = vmatpush1.msra.mxu0 %v341
        %642 = vmatprep.subr.mxu0 %v350
        %643 = vmatpush1.msra.mxu0 %v349
        %644 = vmatprep.subr.mxu0 %v358
        %645 = vmatpush1.msra.mxu0 %v357
        %646 = vmatprep.subr.mxu0 %v366
        %647 = vmatpush1.msra.mxu0 %v365
        %648 = vmatprep.subr.mxu0 %v374
        %649 = vmatpush1.msra.mxu0 %v373
        %650 = vmatprep.subr.mxu0 %v382
        %651 = vmatpush1.msra.mxu0 %v381
        %652 = vmatprep.subr.mxu0 %v390
        %653 = vmatpush1.msra.mxu0 %v389
        %654 = vmatprep.subr.mxu0 0.0
        %655 = vmatpush1.msra.mxu0 0.0
        %656 = vmatprep.subr.mxu0 0.0
        %657 = vmatpush1.msra.mxu0 0.0
        %658 = vmatprep.subr.mxu0 0.0
        %659 = vmatpush1.msra.mxu0 0.0
        %660 = vmatprep.subr.mxu0 0.0
        %661 = vmatpush1.msra.mxu0 0.0
        %662 = vmatprep.subr.mxu0 0.0
        %663 = vmatpush1.msra.mxu0 0.0
        %664 = vmatprep.subr.mxu0 0.0
        %665 = vmatpush1.msra.mxu0 0.0
        %666 = vmatprep.subr.mxu0 0.0
        %667 = vmatpush1.msra.mxu0 0.0
        %668 = vmatprep.subr.mxu0 0.0
        %669 = vmatpush1.msra.mxu0 0.0
        %670 = vmatprep.subr.mxu0 0.0
        %671 = vmatpush1.msra.mxu0 0.0
        %672 = vmatprep.subr.mxu0 0.0
        %673 = vmatpush1.msra.mxu0 0.0
        %674 = vmatprep.subr.mxu0 0.0
        %675 = vmatpush1.msra.mxu0 0.0
        %676 = vmatprep.subr.mxu0 0.0
        %677 = vmatpush1.msra.mxu0 0.0
        %678 = vmatprep.subr.mxu0 0.0
        %679 = vmatpush1.msra.mxu0 0.0
        %680 = vmatprep.subr.mxu0 0.0
        %681 = vmatpush1.msra.mxu0 0.0
        %682 = vmatprep.subr.mxu0 0.0
        %683 = vmatpush1.msra.mxu0 0.0
        %684 = vmatprep.subr.mxu0 0.0
        %685 = vmatpush1.msra.mxu0 0.0
        %686 = vmatprep.mubr.f32.mxu0 0.0
        %687 = vmatmul.mubr.f32.gmra.mrb[0].mxu0 %v261
        %v688 = vpop.f32.mrb[0].mxu0
        %v689 = vadd.f32 0.0, %v688
        %v690 = vpop.f32.mrb[0].mxu0
        %v691 = vadd.f32 0.0, %v690
        %692 = vmatprep.mubr.f32.mxu0 0.0
        %693 = vmatmul.mubr.f32.gmra.mrb[0].mxu0 %v262
        %v694 = vpop.f32.mrb[0].mxu0
        %v695 = vadd.f32 0.0, %v694
        %v696 = vpop.f32.mrb[0].mxu0
        %v697 = vadd.f32 0.0, %v696
        %698 = vdwg.mxu0
        %v699 = vmax.f32 %v458, %v464
        %v700 = vrot.slane %v699, 4
        %v701 = vmax.f32 %v699, %v700
        %v702 = vrot.slane %v701, 2
        %v703 = vmax.f32 %v701, %v702
        %v704 = vrot.slane %v703, 1
        %v705 = vmax.f32 %v703, %v704
        %v706 = vmax.f32 %v460, %v466
        %v707 = vrot.slane %v706, 4
        %v708 = vmax.f32 %v706, %v707
        %v709 = vrot.slane %v708, 2
        %v710 = vmax.f32 %v708, %v709
        %v711 = vrot.slane %v710, 1
        %v712 = vmax.f32 %v710, %v711
        %v713 = vmax.f32 %v535, %v541
        %v714 = vrot.slane %v713, 4
        %v715 = vmax.f32 %v713, %v714
        %v716 = vrot.slane %v715, 2
        %v717 = vmax.f32 %v715, %v716
        %v718 = vrot.slane %v717, 1
        %v719 = vmax.f32 %v717, %v718
        %v720 = vmax.f32 %v537, %v543
        %v721 = vrot.slane %v720, 4
        %v722 = vmax.f32 %v720, %v721
        %v723 = vrot.slane %v722, 2
        %v724 = vmax.f32 %v722, %v723
        %v725 = vrot.slane %v724, 1
        %v726 = vmax.f32 %v724, %v725
        %v727 = vmax.f32 %v612, %v618
        %v728 = vrot.slane %v727, 4
        %v729 = vmax.f32 %v727, %v728
        %v730 = vrot.slane %v729, 2
        %v731 = vmax.f32 %v729, %v730
        %v732 = vrot.slane %v731, 1
        %v733 = vmax.f32 %v731, %v732
        %v734 = vmax.f32 %v614, %v620
        %v735 = vrot.slane %v734, 4
        %v736 = vmax.f32 %v734, %v735
        %v737 = vrot.slane %v736, 2
        %v738 = vmax.f32 %v736, %v737
        %v739 = vrot.slane %v738, 1
        %v740 = vmax.f32 %v738, %v739
        %v741 = vmax.f32 %v689, %v695
        %v742 = vrot.slane %v741, 4
        %v743 = vmax.f32 %v741, %v742
        %v744 = vrot.slane %v743, 2
        %v745 = vmax.f32 %v743, %v744
        %v746 = vrot.slane %v745, 1
        %v747 = vmax.f32 %v745, %v746
        %v748 = vmax.f32 %v691, %v697
        %v749 = vrot.slane %v748, 4
        %v750 = vmax.f32 %v748, %v749
        %v751 = vrot.slane %v750, 2
        %v752 = vmax.f32 %v750, %v751
        %v753 = vrot.slane %v752, 1
        %v754 = vmax.f32 %v752, %v753
        %v755 = vmin.f32 %v458, %v464
        %v756 = vrot.slane %v755, 4
        %v757 = vmin.f32 %v755, %v756
        %v758 = vrot.slane %v757, 2
        %v759 = vmin.f32 %v757, %v758
        %v760 = vrot.slane %v759, 1
        %v761 = vmin.f32 %v759, %v760
        %v762 = vmin.f32 %v460, %v466
        %v763 = vrot.slane %v762, 4
        %v764 = vmin.f32 %v762, %v763
        %v765 = vrot.slane %v764, 2
        %v766 = vmin.f32 %v764, %v765
        %v767 = vrot.slane %v766, 1
        %v768 = vmin.f32 %v766, %v767
        %v769 = vmin.f32 %v535, %v541
        %v770 = vrot.slane %v769, 4
        %v771 = vmin.f32 %v769, %v770
        %v772 = vrot.slane %v771, 2
        %v773 = vmin.f32 %v771, %v772
        %v774 = vrot.slane %v773, 1
        %v775 = vmin.f32 %v773, %v774
        %v776 = vmin.f32 %v537, %v543
        %v777 = vrot.slane %v776, 4
        %v778 = vmin.f32 %v776, %v777
        %v779 = vrot.slane %v778, 2
        %v780 = vmin.f32 %v778, %v779
        %v781 = vrot.slane %v780, 1
        %v782 = vmin.f32 %v780, %v781
        %v783 = vmin.f32 %v612, %v618
        %v784 = vrot.slane %v783, 4
        %v785 = vmin.f32 %v783, %v784
        %v786 = vrot.slane %v785, 2
        %v787 = vmin.f32 %v785, %v786
        %v788 = vrot.slane %v787, 1
        %v789 = vmin.f32 %v787, %v788
        %v790 = vmin.f32 %v614, %v620
        %v791 = vrot.slane %v790, 4
        %v792 = vmin.f32 %v790, %v791
        %v793 = vrot.slane %v792, 2
        %v794 = vmin.f32 %v792, %v793
        %v795 = vrot.slane %v794, 1
        %v796 = vmin.f32 %v794, %v795
        %v797 = vmin.f32 %v689, %v695
        %v798 = vrot.slane %v797, 4
        %v799 = vmin.f32 %v797, %v798
        %v800 = vrot.slane %v799, 2
        %v801 = vmin.f32 %v799, %v800
        %v802 = vrot.slane %v801, 1
        %v803 = vmin.f32 %v801, %v802
        %v804 = vmin.f32 %v691, %v697
        %v805 = vrot.slane %v804, 4
        %v806 = vmin.f32 %v804, %v805
        %v807 = vrot.slane %v806, 2
        %v808 = vmin.f32 %v806, %v807
        %v809 = vrot.slane %v808, 1
        %v810 = vmin.f32 %v808, %v809
        %v811 = vadd.f32 %v458, %v464
        %v812 = vrot.slane %v811, 4
        %v813 = vadd.f32 %v811, %v812
        %v814 = vrot.slane %v813, 2
        %v815 = vadd.f32 %v813, %v814
        %v816 = vrot.slane %v815, 1
        %v817 = vadd.f32 %v815, %v816
        %v818 = vadd.f32 %v460, %v466
        %v819 = vrot.slane %v818, 4
        %v820 = vadd.f32 %v818, %v819
        %v821 = vrot.slane %v820, 2
        %v822 = vadd.f32 %v820, %v821
        %v823 = vrot.slane %v822, 1
        %v824 = vadd.f32 %v822, %v823
        %v825 = vadd.f32 %v535, %v541
        %v826 = vrot.slane %v825, 4
        %v827 = vadd.f32 %v825, %v826
        %v828 = vrot.slane %v827, 2
        %v829 = vadd.f32 %v827, %v828
        %v830 = vrot.slane %v829, 1
        %v831 = vadd.f32 %v829, %v830
        %v832 = vadd.f32 %v537, %v543
        %v833 = vrot.slane %v832, 4
        %v834 = vadd.f32 %v832, %v833
        %v835 = vrot.slane %v834, 2
        %v836 = vadd.f32 %v834, %v835
        %v837 = vrot.slane %v836, 1
        %v838 = vadd.f32 %v836, %v837
        %v839 = vadd.f32 %v612, %v618
        %v840 = vrot.slane %v839, 4
        %v841 = vadd.f32 %v839, %v840
        %v842 = vrot.slane %v841, 2
        %v843 = vadd.f32 %v841, %v842
        %v844 = vrot.slane %v843, 1
        %v845 = vadd.f32 %v843, %v844
        %v846 = vadd.f32 %v614, %v620
        %v847 = vrot.slane %v846, 4
        %v848 = vadd.f32 %v846, %v847
        %v849 = vrot.slane %v848, 2
        %v850 = vadd.f32 %v848, %v849
        %v851 = vrot.slane %v850, 1
        %v852 = vadd.f32 %v850, %v851
        %v853 = vadd.f32 %v689, %v695
        %v854 = vrot.slane %v853, 4
        %v855 = vadd.f32 %v853, %v854
        %v856 = vrot.slane %v855, 2
        %v857 = vadd.f32 %v855, %v856
        %v858 = vrot.slane %v857, 1
        %v859 = vadd.f32 %v857, %v858
        %v860 = vadd.f32 %v691, %v697
        %v861 = vrot.slane %v860, 4
        %v862 = vadd.f32 %v860, %v861
        %v863 = vrot.slane %v862, 2
        %v864 = vadd.f32 %v862, %v863
        %v865 = vrot.slane %v864, 1
        %v866 = vadd.f32 %v864, %v865
        %v867 = vmul.f32 %v458, %v458
        %v868 = vmul.f32 %v460, %v460
        %v869 = vmul.f32 %v535, %v535
        %v870 = vmul.f32 %v537, %v537
        %v871 = vmul.f32 %v612, %v612
        %v872 = vmul.f32 %v614, %v614
        %v873 = vmul.f32 %v689, %v689
        %v874 = vmul.f32 %v691, %v691
        %v875 = vmul.f32 %v464, %v464
        %v876 = vmul.f32 %v466, %v466
        %v877 = vmul.f32 %v541, %v541
        %v878 = vmul.f32 %v543, %v543
        %v879 = vmul.f32 %v618, %v618
        %v880 = vmul.f32 %v620, %v620
        %v881 = vmul.f32 %v695, %v695
        %v882 = vmul.f32 %v697, %v697
        %v883 = vadd.f32 %v867, %v875
        %v884 = vrot.slane %v883, 4
        %v885 = vadd.f32 %v883, %v884
        %v886 = vrot.slane %v885, 2
        %v887 = vadd.f32 %v885, %v886
        %v888 = vrot.slane %v887, 1
        %v889 = vadd.f32 %v887, %v888
        %v890 = vadd.f32 %v868, %v876
        %v891 = vrot.slane %v890, 4
        %v892 = vadd.f32 %v890, %v891
        %v893 = vrot.slane %v892, 2
        %v894 = vadd.f32 %v892, %v893
        %v895 = vrot.slane %v894, 1
        %v896 = vadd.f32 %v894, %v895
        %v897 = vadd.f32 %v869, %v877
        %v898 = vrot.slane %v897, 4
        %v899 = vadd.f32 %v897, %v898
        %v900 = vrot.slane %v899, 2
        %v901 = vadd.f32 %v899, %v900
        %v902 = vrot.slane %v901, 1
        %v903 = vadd.f32 %v901, %v902
        %v904 = vadd.f32 %v870, %v878
        %v905 = vrot.slane %v904, 4
        %v906 = vadd.f32 %v904, %v905
        %v907 = vrot.slane %v906, 2
        %v908 = vadd.f32 %v906, %v907
        %v909 = vrot.slane %v908, 1
        %v910 = vadd.f32 %v908, %v909
        %v911 = vadd.f32 %v871, %v879
        %v912 = vrot.slane %v911, 4
        %v913 = vadd.f32 %v911, %v912
        %v914 = vrot.slane %v913, 2
        %v915 = vadd.f32 %v913, %v914
        %v916 = vrot.slane %v915, 1
        %v917 = vadd.f32 %v915, %v916
        %v918 = vadd.f32 %v872, %v880
        %v919 = vrot.slane %v918, 4
        %v920 = vadd.f32 %v918, %v919
        %v921 = vrot.slane %v920, 2
        %v922 = vadd.f32 %v920, %v921
        %v923 = vrot.slane %v922, 1
        %v924 = vadd.f32 %v922, %v923
        %v925 = vadd.f32 %v873, %v881
        %v926 = vrot.slane %v925, 4
        %v927 = vadd.f32 %v925, %v926
        %v928 = vrot.slane %v927, 2
        %v929 = vadd.f32 %v927, %v928
        %v930 = vrot.slane %v929, 1
        %v931 = vadd.f32 %v929, %v930
        %v932 = vadd.f32 %v874, %v882
        %v933 = vrot.slane %v932, 4
        %v934 = vadd.f32 %v932, %v933
        %v935 = vrot.slane %v934, 2
        %v936 = vadd.f32 %v934, %v935
        %v937 = vrot.slane %v936, 1
        %v938 = vadd.f32 %v936, %v937
        %p939 = scmp.eq.s32.totalorder %s21, 0
        // Predicated region
        $region41: #{pointnet_encoder.9} parent=35 // pred_check
          %p940 = pneg %p939
        $region42: #{pointnet_encoder.9} parent=35 // pred_check_branch
          %942 = sbr.rel (%p940) target = $region44
        $region43: #{pointnet_encoder.9} parent=35 // pred_region
          %v951 = vcombine.low %v705, %v712
          %v952 = vcombine.low %v719, %v726
          %v953 = vcombine.low %v733, %v740
          %v954 = vcombine.low %v747, %v754
          %v956 = vunpack.c.l.s4 1966171168
          %v957 = vunpack.c.0.s8 %v956
          %v958 = vlaneseq
          %v959 = vshrl.u32 %v958, 7
          %v960 = vsub.s32 %v957, %v959
          %v961 = vrot.slane %v951, %v960
          %v963 = vunpack.c.l.s4 1966171168
          %v964 = vunpack.c.0.s8 %v963
          %v965 = vlaneseq
          %v966 = vshrl.u32 %v965, 7
          %v967 = vsub.s32 %v964, %v966
          %v968 = vrot.slane %v952, %v967
          %v970 = vunpack.c.l.s4 1966171168
          %v971 = vunpack.c.0.s8 %v970
          %v972 = vlaneseq
          %v973 = vshrl.u32 %v972, 7
          %v974 = vsub.s32 %v971, %v973
          %v975 = vrot.slane %v953, %v974
          %v977 = vunpack.c.l.s4 1966171168
          %v978 = vunpack.c.0.s8 %v977
          %v979 = vlaneseq
          %v980 = vshrl.u32 %v979, 7
          %v981 = vsub.s32 %v978, %v980
          %v982 = vrot.slane %v954, %v981
          %v983 = vcombine.low %v961, %v968
          %v984 = vcombine.low %v975, %v982
          %v986 = vunpack.c.l.s4 1966171168
          %v987 = vunpack.c.0.s8 %v986
          %v988 = vlaneseq
          %v989 = vshrl.u32 %v988, 7
          %v990 = vsub.s32 %v987, %v989
          %v991 = vrot.slane %v983, %v990
          %v993 = vunpack.c.l.s4 1966171168
          %v994 = vunpack.c.0.s8 %v993
          %v995 = vlaneseq
          %v996 = vshrl.u32 %v995, 7
          %v997 = vsub.s32 %v994, %v996
          %v998 = vrot.slane %v984, %v997
          %v999 = vcombine.low %v991, %v998
          %1001 = vst [vmem:[%s240] ss:$4 sm:$0xff] %v999
          %v1010 = vcombine.low %v761, %v768
          %v1011 = vcombine.low %v775, %v782
          %v1012 = vcombine.low %v789, %v796
          %v1013 = vcombine.low %v803, %v810
          %v1015 = vunpack.c.l.s4 1966171168
          %v1016 = vunpack.c.0.s8 %v1015
          %v1017 = vlaneseq
          %v1018 = vshrl.u32 %v1017, 7
          %v1019 = vsub.s32 %v1016, %v1018
          %v1020 = vrot.slane %v1010, %v1019
          %v1022 = vunpack.c.l.s4 1966171168
          %v1023 = vunpack.c.0.s8 %v1022
          %v1024 = vlaneseq
          %v1025 = vshrl.u32 %v1024, 7
          %v1026 = vsub.s32 %v1023, %v1025
          %v1027 = vrot.slane %v1011, %v1026
          %v1029 = vunpack.c.l.s4 1966171168
          %v1030 = vunpack.c.0.s8 %v1029
          %v1031 = vlaneseq
          %v1032 = vshrl.u32 %v1031, 7
          %v1033 = vsub.s32 %v1030, %v1032
          %v1034 = vrot.slane %v1012, %v1033
          %v1036 = vunpack.c.l.s4 1966171168
          %v1037 = vunpack.c.0.s8 %v1036
          %v1038 = vlaneseq
          %v1039 = vshrl.u32 %v1038, 7
          %v1040 = vsub.s32 %v1037, %v1039
          %v1041 = vrot.slane %v1013, %v1040
          %v1042 = vcombine.low %v1020, %v1027
          %v1043 = vcombine.low %v1034, %v1041
          %v1045 = vunpack.c.l.s4 1966171168
          %v1046 = vunpack.c.0.s8 %v1045
          %v1047 = vlaneseq
          %v1048 = vshrl.u32 %v1047, 7
          %v1049 = vsub.s32 %v1046, %v1048
          %v1050 = vrot.slane %v1042, %v1049
          %v1052 = vunpack.c.l.s4 1966171168
          %v1053 = vunpack.c.0.s8 %v1052
          %v1054 = vlaneseq
          %v1055 = vshrl.u32 %v1054, 7
          %v1056 = vsub.s32 %v1053, %v1055
          %v1057 = vrot.slane %v1043, %v1056
          %v1058 = vcombine.low %v1050, %v1057
          %s1060 = scalar_lea.vmem %s240, 1
          %1061 = vst [vmem:[%s1060] ss:$4 sm:$0xff] %v1058
          %v1070 = vcombine.low %v817, %v824
          %v1071 = vcombine.low %v831, %v838
          %v1072 = vcombine.low %v845, %v852
          %v1073 = vcombine.low %v859, %v866
          %v1075 = vunpack.c.l.s4 1966171168
          %v1076 = vunpack.c.0.s8 %v1075
          %v1077 = vlaneseq
          %v1078 = vshrl.u32 %v1077, 7
          %v1079 = vsub.s32 %v1076, %v1078
          %v1080 = vrot.slane %v1070, %v1079
          %v1082 = vunpack.c.l.s4 1966171168
          %v1083 = vunpack.c.0.s8 %v1082
          %v1084 = vlaneseq
          %v1085 = vshrl.u32 %v1084, 7
          %v1086 = vsub.s32 %v1083, %v1085
          %v1087 = vrot.slane %v1071, %v1086
          %v1089 = vunpack.c.l.s4 1966171168
          %v1090 = vunpack.c.0.s8 %v1089
          %v1091 = vlaneseq
          %v1092 = vshrl.u32 %v1091, 7
          %v1093 = vsub.s32 %v1090, %v1092
          %v1094 = vrot.slane %v1072, %v1093
          %v1096 = vunpack.c.l.s4 1966171168
          %v1097 = vunpack.c.0.s8 %v1096
          %v1098 = vlaneseq
          %v1099 = vshrl.u32 %v1098, 7
          %v1100 = vsub.s32 %v1097, %v1099
          %v1101 = vrot.slane %v1073, %v1100
          %v1102 = vcombine.low %v1080, %v1087
          %v1103 = vcombine.low %v1094, %v1101
          %v1105 = vunpack.c.l.s4 1966171168
          %v1106 = vunpack.c.0.s8 %v1105
          %v1107 = vlaneseq
          %v1108 = vshrl.u32 %v1107, 7
          %v1109 = vsub.s32 %v1106, %v1108
          %v1110 = vrot.slane %v1102, %v1109
          %v1112 = vunpack.c.l.s4 1966171168
          %v1113 = vunpack.c.0.s8 %v1112
          %v1114 = vlaneseq
          %v1115 = vshrl.u32 %v1114, 7
          %v1116 = vsub.s32 %v1113, %v1115
          %v1117 = vrot.slane %v1103, %v1116
          %v1118 = vcombine.low %v1110, %v1117
          %s1120 = scalar_lea.vmem %s240, 2
          %1121 = vst [vmem:[%s1120] ss:$4 sm:$0xff] %v1118
          %v1130 = vcombine.low %v889, %v896
          %v1131 = vcombine.low %v903, %v910
          %v1132 = vcombine.low %v917, %v924
          %v1133 = vcombine.low %v931, %v938
          %v1135 = vunpack.c.l.s4 1966171168
          %v1136 = vunpack.c.0.s8 %v1135
          %v1137 = vlaneseq
          %v1138 = vshrl.u32 %v1137, 7
          %v1139 = vsub.s32 %v1136, %v1138
          %v1140 = vrot.slane %v1130, %v1139
          %v1142 = vunpack.c.l.s4 1966171168
          %v1143 = vunpack.c.0.s8 %v1142
          %v1144 = vlaneseq
          %v1145 = vshrl.u32 %v1144, 7
          %v1146 = vsub.s32 %v1143, %v1145
          %v1147 = vrot.slane %v1131, %v1146
          %v1149 = vunpack.c.l.s4 1966171168
          %v1150 = vunpack.c.0.s8 %v1149
          %v1151 = vlaneseq
          %v1152 = vshrl.u32 %v1151, 7
          %v1153 = vsub.s32 %v1150, %v1152
          %v1154 = vrot.slane %v1132, %v1153
          %v1156 = vunpack.c.l.s4 1966171168
          %v1157 = vunpack.c.0.s8 %v1156
          %v1158 = vlaneseq
          %v1159 = vshrl.u32 %v1158, 7
          %v1160 = vsub.s32 %v1157, %v1159
          %v1161 = vrot.slane %v1133, %v1160
          %v1162 = vcombine.low %v1140, %v1147
          %v1163 = vcombine.low %v1154, %v1161
          %v1165 = vunpack.c.l.s4 1966171168
          %v1166 = vunpack.c.0.s8 %v1165
          %v1167 = vlaneseq
          %v1168 = vshrl.u32 %v1167, 7
          %v1169 = vsub.s32 %v1166, %v1168
          %v1170 = vrot.slane %v1162, %v1169
          %v1172 = vunpack.c.l.s4 1966171168
          %v1173 = vunpack.c.0.s8 %v1172
          %v1174 = vlaneseq
          %v1175 = vshrl.u32 %v1174, 7
          %v1176 = vsub.s32 %v1173, %v1175
          %v1177 = vrot.slane %v1163, %v1176
          %v1178 = vcombine.low %v1170, %v1177
          %s1180 = scalar_lea.vmem %s240, 3
          %1181 = vst [vmem:[%s1180] ss:$4 sm:$0xff] %v1178
        $region44: #{pointnet_encoder.9} parent=35 // pred_fallthru
          _
        %p1182 = scmp.ne.s32.totalorder %s21, 0
        // Predicated region
        $region45: #{pointnet_encoder.9} parent=35 // pred_check
          %p1183 = pneg %p1182
        $region46: #{pointnet_encoder.9} parent=35 // pred_check_branch
          %1185 = sbr.rel (%p1183) target = $region48
        $region47: #{pointnet_encoder.9} parent=35 // pred_region
          %v1186 = vld [vmem:[%s240] ss:$4 sm:$0xff]
          %v1195 = vcombine.low %v705, %v712
          %v1196 = vcombine.low %v719, %v726
          %v1197 = vcombine.low %v733, %v740
          %v1198 = vcombine.low %v747, %v754
          %v1200 = vunpack.c.l.s4 1966171168
          %v1201 = vunpack.c.0.s8 %v1200
          %v1202 = vlaneseq
          %v1203 = vshrl.u32 %v1202, 7
          %v1204 = vsub.s32 %v1201, %v1203
          %v1205 = vrot.slane %v1195, %v1204
          %v1207 = vunpack.c.l.s4 1966171168
          %v1208 = vunpack.c.0.s8 %v1207
          %v1209 = vlaneseq
          %v1210 = vshrl.u32 %v1209, 7
          %v1211 = vsub.s32 %v1208, %v1210
          %v1212 = vrot.slane %v1196, %v1211
          %v1214 = vunpack.c.l.s4 1966171168
          %v1215 = vunpack.c.0.s8 %v1214
          %v1216 = vlaneseq
          %v1217 = vshrl.u32 %v1216, 7
          %v1218 = vsub.s32 %v1215, %v1217
          %v1219 = vrot.slane %v1197, %v1218
          %v1221 = vunpack.c.l.s4 1966171168
          %v1222 = vunpack.c.0.s8 %v1221
          %v1223 = vlaneseq
          %v1224 = vshrl.u32 %v1223, 7
          %v1225 = vsub.s32 %v1222, %v1224
          %v1226 = vrot.slane %v1198, %v1225
          %v1227 = vcombine.low %v1205, %v1212
          %v1228 = vcombine.low %v1219, %v1226
          %v1230 = vunpack.c.l.s4 1966171168
          %v1231 = vunpack.c.0.s8 %v1230
          %v1232 = vlaneseq
          %v1233 = vshrl.u32 %v1232, 7
          %v1234 = vsub.s32 %v1231, %v1233
          %v1235 = vrot.slane %v1227, %v1234
          %v1237 = vunpack.c.l.s4 1966171168
          %v1238 = vunpack.c.0.s8 %v1237
          %v1239 = vlaneseq
          %v1240 = vshrl.u32 %v1239, 7
          %v1241 = vsub.s32 %v1238, %v1240
          %v1242 = vrot.slane %v1228, %v1241
          %v1243 = vcombine.low %v1235, %v1242
          %v1245 = vmax.f32 %v1186, %v1243
          %1246 = vst [vmem:[%s240] ss:$4 sm:$0xff] %v1245
          %s1247 = scalar_lea.vmem %s240, 1
          %v1248 = vld [vmem:[%s1247] ss:$4 sm:$0xff]
          %v1257 = vcombine.low %v761, %v768
          %v1258 = vcombine.low %v775, %v782
          %v1259 = vcombine.low %v789, %v796
          %v1260 = vcombine.low %v803, %v810
          %v1262 = vunpack.c.l.s4 1966171168
          %v1263 = vunpack.c.0.s8 %v1262
          %v1264 = vlaneseq
          %v1265 = vshrl.u32 %v1264, 7
          %v1266 = vsub.s32 %v1263, %v1265
          %v1267 = vrot.slane %v1257, %v1266
          %v1269 = vunpack.c.l.s4 1966171168
          %v1270 = vunpack.c.0.s8 %v1269
          %v1271 = vlaneseq
          %v1272 = vshrl.u32 %v1271, 7
          %v1273 = vsub.s32 %v1270, %v1272
          %v1274 = vrot.slane %v1258, %v1273
          %v1276 = vunpack.c.l.s4 1966171168
          %v1277 = vunpack.c.0.s8 %v1276
          %v1278 = vlaneseq
          %v1279 = vshrl.u32 %v1278, 7
          %v1280 = vsub.s32 %v1277, %v1279
          %v1281 = vrot.slane %v1259, %v1280
          %v1283 = vunpack.c.l.s4 1966171168
          %v1284 = vunpack.c.0.s8 %v1283
          %v1285 = vlaneseq
          %v1286 = vshrl.u32 %v1285, 7
          %v1287 = vsub.s32 %v1284, %v1286
          %v1288 = vrot.slane %v1260, %v1287
          %v1289 = vcombine.low %v1267, %v1274
          %v1290 = vcombine.low %v1281, %v1288
          %v1292 = vunpack.c.l.s4 1966171168
          %v1293 = vunpack.c.0.s8 %v1292
          %v1294 = vlaneseq
          %v1295 = vshrl.u32 %v1294, 7
          %v1296 = vsub.s32 %v1293, %v1295
          %v1297 = vrot.slane %v1289, %v1296
          %v1299 = vunpack.c.l.s4 1966171168
          %v1300 = vunpack.c.0.s8 %v1299
          %v1301 = vlaneseq
          %v1302 = vshrl.u32 %v1301, 7
          %v1303 = vsub.s32 %v1300, %v1302
          %v1304 = vrot.slane %v1290, %v1303
          %v1305 = vcombine.low %v1297, %v1304
          %v1307 = vmin.f32 %v1248, %v1305
          %1308 = vst [vmem:[%s1247] ss:$4 sm:$0xff] %v1307
          %s1309 = scalar_lea.vmem %s240, 2
          %v1310 = vld [vmem:[%s1309] ss:$4 sm:$0xff]
          %v1319 = vcombine.low %v817, %v824
          %v1320 = vcombine.low %v831, %v838
          %v1321 = vcombine.low %v845, %v852
          %v1322 = vcombine.low %v859, %v866
          %v1324 = vunpack.c.l.s4 1966171168
          %v1325 = vunpack.c.0.s8 %v1324
          %v1326 = vlaneseq
          %v1327 = vshrl.u32 %v1326, 7
          %v1328 = vsub.s32 %v1325, %v1327
          %v1329 = vrot.slane %v1319, %v1328
          %v1331 = vunpack.c.l.s4 1966171168
          %v1332 = vunpack.c.0.s8 %v1331
          %v1333 = vlaneseq
          %v1334 = vshrl.u32 %v1333, 7
          %v1335 = vsub.s32 %v1332, %v1334
          %v1336 = vrot.slane %v1320, %v1335
          %v1338 = vunpack.c.l.s4 1966171168
          %v1339 = vunpack.c.0.s8 %v1338
          %v1340 = vlaneseq
          %v1341 = vshrl.u32 %v1340, 7
          %v1342 = vsub.s32 %v1339, %v1341
          %v1343 = vrot.slane %v1321, %v1342
          %v1345 = vunpack.c.l.s4 1966171168
          %v1346 = vunpack.c.0.s8 %v1345
          %v1347 = vlaneseq
          %v1348 = vshrl.u32 %v1347, 7
          %v1349 = vsub.s32 %v1346, %v1348
          %v1350 = vrot.slane %v1322, %v1349
          %v1351 = vcombine.low %v1329, %v1336
          %v1352 = vcombine.low %v1343, %v1350
          %v1354 = vunpack.c.l.s4 1966171168
          %v1355 = vunpack.c.0.s8 %v1354
          %v1356 = vlaneseq
          %v1357 = vshrl.u32 %v1356, 7
          %v1358 = vsub.s32 %v1355, %v1357
          %v1359 = vrot.slane %v1351, %v1358
          %v1361 = vunpack.c.l.s4 1966171168
          %v1362 = vunpack.c.0.s8 %v1361
          %v1363 = vlaneseq
          %v1364 = vshrl.u32 %v1363, 7
          %v1365 = vsub.s32 %v1362, %v1364
          %v1366 = vrot.slane %v1352, %v1365
          %v1367 = vcombine.low %v1359, %v1366
          %v1369 = vadd.f32 %v1310, %v1367
          %1370 = vst [vmem:[%s1309] ss:$4 sm:$0xff] %v1369
          %s1371 = scalar_lea.vmem %s240, 3
          %v1372 = vld [vmem:[%s1371] ss:$4 sm:$0xff]
          %v1381 = vcombine.low %v889, %v896
          %v1382 = vcombine.low %v903, %v910
          %v1383 = vcombine.low %v917, %v924
          %v1384 = vcombine.low %v931, %v938
          %v1386 = vunpack.c.l.s4 1966171168
          %v1387 = vunpack.c.0.s8 %v1386
          %v1388 = vlaneseq
          %v1389 = vshrl.u32 %v1388, 7
          %v1390 = vsub.s32 %v1387, %v1389
          %v1391 = vrot.slane %v1381, %v1390
          %v1393 = vunpack.c.l.s4 1966171168
          %v1394 = vunpack.c.0.s8 %v1393
          %v1395 = vlaneseq
          %v1396 = vshrl.u32 %v1395, 7
          %v1397 = vsub.s32 %v1394, %v1396
          %v1398 = vrot.slane %v1382, %v1397
          %v1400 = vunpack.c.l.s4 1966171168
          %v1401 = vunpack.c.0.s8 %v1400
          %v1402 = vlaneseq
          %v1403 = vshrl.u32 %v1402, 7
          %v1404 = vsub.s32 %v1401, %v1403
          %v1405 = vrot.slane %v1383, %v1404
          %v1407 = vunpack.c.l.s4 1966171168
          %v1408 = vunpack.c.0.s8 %v1407
          %v1409 = vlaneseq
          %v1410 = vshrl.u32 %v1409, 7
          %v1411 = vsub.s32 %v1408, %v1410
          %v1412 = vrot.slane %v1384, %v1411
          %v1413 = vcombine.low %v1391, %v1398
          %v1414 = vcombine.low %v1405, %v1412
          %v1416 = vunpack.c.l.s4 1966171168
          %v1417 = vunpack.c.0.s8 %v1416
          %v1418 = vlaneseq
          %v1419 = vshrl.u32 %v1418, 7
          %v1420 = vsub.s32 %v1417, %v1419
          %v1421 = vrot.slane %v1413, %v1420
          %v1423 = vunpack.c.l.s4 1966171168
          %v1424 = vunpack.c.0.s8 %v1423
          %v1425 = vlaneseq
          %v1426 = vshrl.u32 %v1425, 7
          %v1427 = vsub.s32 %v1424, %v1426
          %v1428 = vrot.slane %v1414, %v1427
          %v1429 = vcombine.low %v1421, %v1428
          %v1431 = vadd.f32 %v1372, %v1429
          %1432 = vst [vmem:[%s1371] ss:$4 sm:$0xff] %v1431
        $region48: #{pointnet_encoder.9} parent=35 // pred_fallthru
          _
        %p1433 = scmp.lt.s32.totalorder %s20, 1
        %s1434 = scalar_select %p1433, %s20, 1
        %s1435 = smul.addr %s1434, 8
        %s1436 = smul.addr %s1435, 4
        %s1437 = scalar_lea.vmem %s4, %s1436
        // Predicated region
        $region49: #{pointnet_encoder.9} parent=35 // pred_check
          %p1438 = pneg %p137
        $region50: #{pointnet_encoder.9} parent=35 // pred_check_branch
          %1440 = sbr.rel (%p1438) target = $region52
        $region51: #{pointnet_encoder.9} parent=35 // pred_region
          _
        $region52: #{pointnet_encoder.9} parent=35 // pred_fallthru
          _
      $region36: #{pointnet_encoder.9} parent=5 // pred_fallthru
        _
      %p1441 = scmp.le.s32.totalorder 2, %s11
      // Predicated region
      $region53: #{pointnet_encoder.9} parent=5 // pred_check
        %p1442 = pneg %p1441
      $region54: #{pointnet_encoder.9} parent=5 // pred_check_branch
        %1444 = sbr.rel (%p1442) target = $region56
      $region55: #{pointnet_encoder.9} parent=5 // pred_region
        %s1445 = ssub.s32 %s11, 2
        // Predicated region
        $region57: #{pointnet_encoder.9} parent=55 // pred_check
          %p1446 = pneg %p143
        $region58: #{pointnet_encoder.9} parent=55 // pred_check_branch
          %1448 = sbr.rel (%p1446) target = $region60
        $region59: #{pointnet_encoder.9} parent=55 // pred_region
          %p1449 = scmp.lt.s32.totalorder %s22, 1
          %s1450 = scalar_select %p1449, %s22, 1
          %s1451 = smul.addr %s1450, 8
          %s1452 = smul.addr %s1451, 4
          %s1453 = scalar_lea.vmem %s4, %s1452
        $region60: #{pointnet_encoder.9} parent=55 // pred_fallthru
          _
      $region56: #{pointnet_encoder.9} parent=5 // pred_fallthru
        _
    $region6: #{pointnet_encoder.9} parent=1 // loop_footer
      %s15 = sadd.s32 1, %s11
    $region7: #{pointnet_encoder.9} parent=1 // loop_footer_branch
      %10 = sbr.rel target = $region3
    $region8: #{pointnet_encoder.9} parent=1 // loop_exit
      _
    %1454 = vsyncpa [#allocation3], 1
    %s1455 = scalar_lea.sflag [#allocation3], 1
    %1456 = vsyncpa %s1455, 1

</llo_original>
